<compile_context>
chip_gen: v7x
topology: tpu7x:2x2x1
jax: 0.10.0
libtpu: 0.0.40
codegen_flags: <defaults>
</compile_context>

<pallas_src>
import functools

import jax
import jax.numpy as jnp
from jax import lax
from jax.experimental import pallas as pl
from jax.experimental.pallas import tpu as pltpu


# ---------------------------------------------------------------------------
# Kernel
# ---------------------------------------------------------------------------
def _conv_stage(src, w_ref, b_ref, L):
    """3x3 conv (dy already folded into K) + bias + LeakyReLU + PixelNorm.

    src   : (3*C_src, L+2) bf16 dy-stacked source (flat padded-row layout)
    w_ref : (3, C_out, 3*C_src) bf16  -- one (C_out, 3*C_src) matrix per dx
    b_ref : (C_out, 1) f32
    returns (C_out, L) f32
    """
    acc = (jnp.dot(w_ref[0], src[:, 0:L], preferred_element_type=jnp.float32)
           + jnp.dot(w_ref[1], src[:, 1:L + 1], preferred_element_type=jnp.float32)
           + jnp.dot(w_ref[2], src[:, 2:L + 2], preferred_element_type=jnp.float32))
    y = acc + b_ref[...]
    y = jnp.maximum(y, 0.2 * y)                       # LeakyReLU(0.2), 2 VALU ops
    inv = lax.rsqrt(jnp.mean(y * y, axis=0, keepdims=True) + 1e-8)
    return y * inv                                    # PixelNorm over channels


def _g_block_kernel(x_ref, w1_ref, b1_ref, w2_ref, b2_ref, o_ref,
                    *, Hb, Wp, num_bands):
    """One (batch, band) step.

    x_ref : (C_in, Lb_in) bf16  flat band of the padded, 2x-upsampled input
            (Hb+4 padded rows of width Wrow = Wp+2, plus 2 slack lanes)
    w*_ref: (3, C_out, 3*C) bf16 dy-stacked weights (EqLR scale folded in)
    b*_ref: (C_out, 1) f32
    o_ref : (C_out, L2) f32 flat output band (Hb rows of width Wrow; the 2
            junk columns per row are cropped by the wrapper)
    """
    Wrow = Wp + 2
    L1 = (Hb + 2) * Wrow            # intermediate y1 band (Hb+2 rows, halo'd)
    L2 = Hb * Wrow                  # output band
    b = pl.program_id(1)
    C_out = o_ref.shape[0]

    # ---- conv1 + LeakyReLU + PixelNorm (K = 3*C_in, 3 MXU matmuls) ----------
    s1 = jnp.concatenate(
        [x_ref[:, 0:L1 + 2],
         x_ref[:, Wrow:Wrow + L1 + 2],
         x_ref[:, 2 * Wrow:2 * Wrow + L1 + 2]], axis=0)        # (3*C_in, L1+2)
    y1 = _conv_stage(s1, w1_ref, b1_ref, L1)                   # (C_out, L1) f32

    # ---- zero junk columns + out-of-image halo rows (in-kernel, no mask in) --
    lane = lax.broadcasted_iota(jnp.int32, (1, L1), 1)
    colpat = lax.broadcasted_iota(jnp.int32, (1, Wrow), 1)     # 0..Wrow-1
    while colpat.shape[1] < L1:                                # trace-time tile
        colpat = jnp.concatenate([colpat, colpat], axis=1)
    col_in_row = colpat[:, :L1]
    valid = col_in_row < Wp                                    # junk columns -> 0
    lo_bound = jnp.where(b == 0, Wrow, 0)                      # top halo row of band 0
    hi_bound = jnp.where(b == num_bands - 1, (Hb + 1) * Wrow, L1)  # bottom halo row
    valid = jnp.logical_and(valid, lane >= lo_bound)
    valid = jnp.logical_and(valid, lane < hi_bound)
    y1m = jnp.where(valid, y1, 0.0).astype(jnp.bfloat16)       # (C_out, L1) bf16

    # ---- conv2 + LeakyReLU + PixelNorm --------------------------------------
    zcol = jnp.zeros((C_out, 1), jnp.bfloat16)
    ypad = jnp.concatenate([zcol, y1m, zcol], axis=1)          # (C_out, L1+2)
    s2 = jnp.concatenate(
        [ypad[:, 0:L2 + 2],
         ypad[:, Wrow:Wrow + L2 + 2],
         ypad[:, 2 * Wrow:2 * Wrow + L2 + 2]], axis=0)         # (3*C_out, L2+2)
    y2 = _conv_stage(s2, w2_ref, b2_ref, L2)                   # (C_out, L2) f32

    o_ref[...] = y2.astype(o_ref.dtype)


# ---------------------------------------------------------------------------
# Band / VMEM sizing helpers
# ---------------------------------------------------------------------------
def _vmem_budget_bytes():
    try:
        cap = int(pltpu.get_tpu_info().vmem_capacity_bytes)
        if cap >= 16 * 1024 * 1024:
            return min(cap, 128 * 1024 * 1024)
    except Exception:
        pass
    return 64 * 1024 * 1024       # safe for v5e/v6e (128 MiB) and v7x (64 MiB)


def _band_vmem_bytes(Hb, C_in, C_out, Wrow):
    """Conservative per-band VMEM footprint estimate (bytes)."""
    L1 = (Hb + 2) * Wrow
    L2 = Hb * Wrow
    Lb_in = (Hb + 4) * Wrow + 2
    total = 0
    total += 2 * C_in * Lb_in * 2             # double-buffered bf16 input block
    total += 2 * C_out * L2 * 4               # double-buffered f32 output block
    total += 3 * C_in * (L1 + 2) * 2          # s1 stacked source (bf16)
    total += 2 * C_out * L1 * 4               # acc1 / y1 (f32)
    total += C_out * L1 * 2                   # y1m (bf16)
    total += C_out * (L1 + 2) * 2             # ypad (bf16)
    total += 3 * C_out * (L2 + 2) * 2         # s2 stacked source (bf16)
    total += 2 * C_out * L2 * 4               # acc2 / y2 (f32)
    total += (9 * C_out * C_in + 9 * C_out * C_out) * 2 + 2 * C_out * 4  # weights
    return int(total * 1.25)                  # slack for misaligned-slice copies


def _divisors_desc(n):
    ds = set()
    i = 1
    while i * i <= n:
        if n % i == 0:
            ds.add(i)
            ds.add(n // i)
        i += 1
    return sorted(ds, reverse=True)


def _pick_band_rows(Hp, C_in, C_out, Wrow, budget, band_rows, batch):
    cap = Hp if band_rows is None else max(1, min(int(band_rows), Hp))
    cap = min(cap, 512)                       # pipelining sweet spot
    divs = _divisors_desc(Hp)
    fit = [d for d in divs
           if d <= cap and _band_vmem_bytes(d, C_in, C_out, Wrow) <= 0.45 * budget]
    hb = fit[0] if fit else 1
    # v7x has 2 TensorCores: make sure there are >= 2 parallel work units.
    if batch == 1 and hb == Hp and Hp > 1:
        smaller = [d for d in divs if d < Hp]
        if smaller:
            hb = smaller[0]
    return hb


# ---------------------------------------------------------------------------
# Public wrapper
# ---------------------------------------------------------------------------
def g_block(x, w1, b1, w2, b2, *, initial_block=False, band_rows=None):
    """ProGAN G_Block forward (non-initial block).

    x  : (N, C_in, H, W) float32
    w1 : (C_out, C_in, 3, 3)   b1: (C_out,)
    w2 : (C_out, C_out, 3, 3)  b2: (C_out,)
    returns (N, C_out, 2H, 2W) float32
    """
    if initial_block:
        # TODO(synk): initial_block=True path (4x4 conv, padding 3, no upsample).
        raise NotImplementedError("initial_block=True path not implemented")

    N, C_in, H, W = (int(d) for d in x.shape)
    C_out = int(w1.shape[0])
    Hp, Wp = 2 * H, 2 * W
    Wrow = Wp + 2

    budget = _vmem_budget_bytes()
    Hb = _pick_band_rows(Hp, C_in, C_out, Wrow, budget, band_rows, N)
    num_bands = Hp // Hb
    L2 = Hb * Wrow
    Lb_in = (Hb + 4) * Wrow + 2

    # ---- XLA glue: nearest-2x upsample (bf16), pad, halo'd band gather ------
    # TODO(synk): fuse upsample/pad/band-gather into the kernel (manual DMA of
    #             the raw NCHW block + in-VMEM duplication) to cut the input
    #             HBM traffic further, largest relative win on v5e.
    x16 = x.astype(jnp.bfloat16)
    x_up = jnp.repeat(jnp.repeat(x16, 2, axis=2), 2, axis=3)          # (N,C,Hp,Wp)
    xpe = jnp.pad(x_up, ((0, 0), (0, 0), (2, 2), (1, 1)))             # (N,C,Hp+4,Wrow)
    bands = jnp.stack(
        [xpe[:, :, b * Hb: b * Hb + Hb + 4, :] for b in range(num_bands)],
        axis=1)                                                        # (N,nb,C,Hb+4,Wrow)
    x_bands = bands.reshape(N, num_bands, C_in, (Hb + 4) * Wrow)
    x_bands = jnp.pad(x_bands, ((0, 0), (0, 0), (0, 0), (0, 2)))       # (..., Lb_in)

    # ---- EqualizedLR scale folded into bf16, dy-stacked (K = 3*C) weights ---
    sc1 = (2.0 / (C_in * 9)) ** 0.5
    sc2 = (2.0 / (C_out * 9)) ** 0.5
    w1t = (w1.astype(jnp.float32) * sc1).transpose(3, 0, 2, 1) \
        .reshape(3, C_out, 3 * C_in).astype(jnp.bfloat16)
    w2t = (w2.astype(jnp.float32) * sc2).transpose(3, 0, 2, 1) \
        .reshape(3, C_out, 3 * C_out).astype(jnp.bfloat16)
    b1c = b1.reshape(C_out, 1).astype(jnp.float32)
    b2c = b2.reshape(C_out, 1).astype(jnp.float32)

    kernel = functools.partial(_g_block_kernel, Hb=Hb, Wp=Wp, num_bands=num_bands)

    vmem_est = _band_vmem_bytes(Hb, C_in, C_out, Wrow)
    vmem_limit = int(min(0.94 * budget, max(vmem_est, 32 * 1024 * 1024)))
    flops = 2 * N * Hp * Wp * 9 * (C_in * C_out + C_out * C_out)
    bytes_acc = (x_bands.size * 2 + N * num_bands * C_out * L2 * 4
                 + w1t.size * 2 + w2t.size * 2 + (b1c.size + b2c.size) * 4)

    out_bands = pl.pallas_call(
        kernel,
        out_shape=jax.ShapeDtypeStruct((N, num_bands, C_out, L2), jnp.float32),
        grid=(N, num_bands),
        in_specs=[
            pl.BlockSpec((None, None, C_in, Lb_in), lambda n, b: (n, b, 0, 0)),
            pl.BlockSpec((3, C_out, 3 * C_in), lambda n, b: (0, 0, 0)),
            pl.BlockSpec((C_out, 1), lambda n, b: (0, 0)),
            pl.BlockSpec((3, C_out, 3 * C_out), lambda n, b: (0, 0, 0)),
            pl.BlockSpec((C_out, 1), lambda n, b: (0, 0)),
        ],
        out_specs=pl.BlockSpec((None, None, C_out, L2), lambda n, b: (n, b, 0, 0)),
        compiler_params=pltpu.CompilerParams(
            dimension_semantics=("parallel", "parallel"),
            vmem_limit_bytes=vmem_limit),
        cost_estimate=pl.CostEstimate(
            flops=int(flops),
            transcendentals=int(2 * N * Hp * Wp),
            bytes_accessed=int(bytes_acc)),
    )(x_bands, w1t, b1c, w2t, b2c)

    # Reassemble bands, drop the 2 junk columns per row -> (N, C_out, Hp, Wp).
    out = (out_bands.transpose(0, 2, 1, 3)
           .reshape(N, C_out, Hp, Wrow)[:, :, :, :Wp])
    return out


# ---------------------------------------------------------------------------
if __name__ == "__main__":
    key = jax.random.PRNGKey(0)
    k_x, k_w1, k_w2, k_b1, k_b2 = jax.random.split(key, 5)

    N, in_ch, out_ch, S = 2, 4, 8, 16
    x = jax.random.normal(k_x, (N, in_ch, S, S), dtype=jnp.float32)
    w1 = jax.random.normal(k_w1, (out_ch, in_ch, 3, 3), dtype=jnp.float32)
    w2 = jax.random.normal(k_w2, (out_ch, out_ch, 3, 3), dtype=jnp.float32)
    b1 = 0.1 * jax.random.normal(k_b1, (out_ch,), dtype=jnp.float32)
    b2 = 0.1 * jax.random.normal(k_b2, (out_ch,), dtype=jnp.float32)

    # Default band choice (whole image fits) and a forced multi-band run to
    # exercise the halo'd row-band path.
    out_a = g_block(x, w1, b1, w2, b2)
    out_b = g_block(x, w1, b1, w2, b2, band_rows=8)
    jax.block_until_ready(out_a)
    jax.block_until_ready(out_b)
    assert out_a.shape == (N, out_ch, 2 * S, 2 * S)
    assert out_b.shape == (N, out_ch, 2 * S, 2 * S)

    # Pure-JAX f32 reference.
    def ref_fn(x):
        dn = ("NCHW", "OIHW", "NCHW")
        s1 = (2.0 / (in_ch * 9)) ** 0.5
        s2 = (2.0 / (out_ch * 9)) ** 0.5
        xu = jnp.repeat(jnp.repeat(x, 2, axis=2), 2, axis=3)
        y = lax.conv_general_dilated(xu, w1 * s1, (1, 1), ((1, 1), (1, 1)),
                                     dimension_numbers=dn,
                                     precision=lax.Precision.HIGHEST)
        y = y + b1.reshape(1, -1, 1, 1)
        y = jnp.where(y >= 0, y, 0.2 * y)
        y = y * lax.rsqrt(jnp.mean(y * y, axis=1, keepdims=True) + 1e-8)
        y = lax.conv_general_dilated(y, w2 * s2, (1, 1), ((1, 1), (1, 1)),
                                     dimension_numbers=dn,
                                     precision=lax.Precision.HIGHEST)
        y = y + b2.reshape(1, -1, 1, 1)
        y = jnp.where(y >= 0, y, 0.2 * y)
        y = y * lax.rsqrt(jnp.mean(y * y, axis=1, keepdims=True) + 1e-8)
        return y

    ref = ref_fn(x)
    for out in (out_a, out_b):
        mae = float(jnp.mean(jnp.abs(out - ref)))
        ok = bool(jnp.allclose(out, ref, atol=5e-2, rtol=5e-2))
        assert ok and mae < 2e-2, (ok, mae)

    print("KERNEL_OK")
</pallas_src>

<mosaic_0001>
module attributes {stable_mosaic.version = 11 : i64} {
  func.func @_g_block_kernel(%arg0: i32, %arg1: i32, %arg2: memref<1x1x4x1226xbf16, #tpu.memory_space<vmem>>, %arg3: memref<3x8x12xbf16, #tpu.memory_space<vmem>>, %arg4: memref<8x1xf32, #tpu.memory_space<vmem>>, %arg5: memref<3x8x24xbf16, #tpu.memory_space<vmem>>, %arg6: memref<8x1xf32, #tpu.memory_space<vmem>>, %arg7: memref<1x1x8x1088xf32, #tpu.memory_space<vmem>>) attributes {dimension_semantics = [#tpu.dimension_semantics<parallel>, #tpu.dimension_semantics<parallel>], iteration_bounds = array<i64: 2, 1>, scalar_prefetch = 0 : i64, scratch_operands = 0 : i64, tpu.core_type = #tpu.core_type<tc>, window_params = [{transform_indices = @transform_0, window_bounds = array<i64: 1, 1, 4, 1226>}, {pipeline_mode = #tpu.pipeline_mode<synchronous>, transform_indices = @transform_1, window_bounds = array<i64: 3, 8, 12>}, {pipeline_mode = #tpu.pipeline_mode<synchronous>, transform_indices = @transform_2, window_bounds = array<i64: 8, 1>}, {pipeline_mode = #tpu.pipeline_mode<synchronous>, transform_indices = @transform_3, window_bounds = array<i64: 3, 8, 24>}, {pipeline_mode = #tpu.pipeline_mode<synchronous>, transform_indices = @transform_4, window_bounds = array<i64: 8, 1>}, {transform_indices = @transform_5, window_bounds = array<i64: 1, 1, 8, 1088>}]} {
    %c0 = arith.constant 0 : index
    %c0_0 = arith.constant 0 : index
    %c0_1 = arith.constant 0 : index
    %c0_2 = arith.constant 0 : index
    %0 = vector.load %arg2[%c0, %c0_0, %c0_1, %c0_2] : memref<1x1x4x1226xbf16, #tpu.memory_space<vmem>>, vector<1x1x4x1158xbf16>
    %1 = vector.shape_cast %0 : vector<1x1x4x1158xbf16> to vector<4x1158xbf16>
    %c0_3 = arith.constant 0 : index
    %c0_4 = arith.constant 0 : index
    %c0_5 = arith.constant 0 : index
    %c34 = arith.constant 34 : index
    %2 = vector.load %arg2[%c0_3, %c0_4, %c0_5, %c34] : memref<1x1x4x1226xbf16, #tpu.memory_space<vmem>>, vector<1x1x4x1158xbf16>
    %3 = vector.shape_cast %2 : vector<1x1x4x1158xbf16> to vector<4x1158xbf16>
    %c0_6 = arith.constant 0 : index
    %c0_7 = arith.constant 0 : index
    %c0_8 = arith.constant 0 : index
    %c68 = arith.constant 68 : index
    %4 = vector.load %arg2[%c0_6, %c0_7, %c0_8, %c68] : memref<1x1x4x1226xbf16, #tpu.memory_space<vmem>>, vector<1x1x4x1158xbf16>
    %5 = vector.shape_cast %4 : vector<1x1x4x1158xbf16> to vector<4x1158xbf16>
    %6 = tpu.concatenate %1, %3, %5 in 0 : vector<4x1158xbf16>, vector<4x1158xbf16>, vector<4x1158xbf16> -> vector<12x1158xbf16>
    %c0_9 = arith.constant 0 : index
    %c0_10 = arith.constant 0 : index
    %c0_11 = arith.constant 0 : index
    %7 = vector.load %arg3[%c0_9, %c0_10, %c0_11] : memref<3x8x12xbf16, #tpu.memory_space<vmem>>, vector<1x8x12xbf16>
    %8 = vector.shape_cast %7 : vector<1x8x12xbf16> to vector<8x12xbf16>
    %9 = vector.extract_strided_slice %6 {offsets = [0, 0], sizes = [12, 1156], strides = [1, 1]} : vector<12x1158xbf16> to vector<12x1156xbf16>
    %cst = arith.constant dense<0.000000e+00> : vector<8x1156xf32>
    %10 = tpu.matmul %8, %9, %cst {dimension_numbers = #tpu.dot_dimension_numbers<[1], [0], [0], [1], [0, 0, 1, 1], [], []>} : vector<8x12xbf16>, vector<12x1156xbf16>, vector<8x1156xf32> -> vector<8x1156xf32>
    %c1 = arith.constant 1 : index
    %c0_12 = arith.constant 0 : index
    %c0_13 = arith.constant 0 : index
    %11 = vector.load %arg3[%c1, %c0_12, %c0_13] : memref<3x8x12xbf16, #tpu.memory_space<vmem>>, vector<1x8x12xbf16>
    %12 = vector.shape_cast %11 : vector<1x8x12xbf16> to vector<8x12xbf16>
    %13 = vector.extract_strided_slice %6 {offsets = [0, 1], sizes = [12, 1156], strides = [1, 1]} : vector<12x1158xbf16> to vector<12x1156xbf16>
    %cst_14 = arith.constant dense<0.000000e+00> : vector<8x1156xf32>
    %14 = tpu.matmul %12, %13, %cst_14 {dimension_numbers = #tpu.dot_dimension_numbers<[1], [0], [0], [1], [0, 0, 1, 1], [], []>} : vector<8x12xbf16>, vector<12x1156xbf16>, vector<8x1156xf32> -> vector<8x1156xf32>
    %15 = arith.addf %10, %14 : vector<8x1156xf32>
    %c2 = arith.constant 2 : index
    %c0_15 = arith.constant 0 : index
    %c0_16 = arith.constant 0 : index
    %16 = vector.load %arg3[%c2, %c0_15, %c0_16] : memref<3x8x12xbf16, #tpu.memory_space<vmem>>, vector<1x8x12xbf16>
    %17 = vector.shape_cast %16 : vector<1x8x12xbf16> to vector<8x12xbf16>
    %18 = vector.extract_strided_slice %6 {offsets = [0, 2], sizes = [12, 1156], strides = [1, 1]} : vector<12x1158xbf16> to vector<12x1156xbf16>
    %cst_17 = arith.constant dense<0.000000e+00> : vector<8x1156xf32>
    %19 = tpu.matmul %17, %18, %cst_17 {dimension_numbers = #tpu.dot_dimension_numbers<[1], [0], [0], [1], [0, 0, 1, 1], [], []>} : vector<8x12xbf16>, vector<12x1156xbf16>, vector<8x1156xf32> -> vector<8x1156xf32>
    %20 = arith.addf %15, %19 : vector<8x1156xf32>
    %c0_18 = arith.constant 0 : index
    %c0_19 = arith.constant 0 : index
    %21 = vector.load %arg4[%c0_18, %c0_19] : memref<8x1xf32, #tpu.memory_space<vmem>>, vector<8x1xf32>
    %22 = vector.broadcast %21 : vector<8x1xf32> to vector<8x1156xf32>
    %23 = arith.addf %20, %22 : vector<8x1156xf32>
    %cst_20 = arith.constant 2.000000e-01 : f32
    %24 = vector.broadcast %cst_20 : f32 to vector<8x1156xf32>
    %25 = arith.mulf %24, %23 : vector<8x1156xf32>
    %26 = arith.maximumf %23, %25 : vector<8x1156xf32>
    %27 = arith.mulf %26, %26 : vector<8x1156xf32>
    %cst_21 = arith.constant dense<0.000000e+00> : vector<1156xf32>
    %28 = vector.multi_reduction <add>, %27, %cst_21 [0] : vector<8x1156xf32> to vector<1156xf32>
    %29 = vector.shape_cast %28 : vector<1156xf32> to vector<1x1156xf32>
    %cst_22 = arith.constant 8.000000e+00 : f32
    %30 = vector.broadcast %cst_22 : f32 to vector<1x1156xf32>
    %31 = arith.divf %29, %30 : vector<1x1156xf32>
    %cst_23 = arith.constant 9.99999993E-9 : f32
    %32 = vector.broadcast %cst_23 : f32 to vector<1x1156xf32>
    %33 = arith.addf %31, %32 : vector<1x1156xf32>
    %34 = math.rsqrt %33 : vector<1x1156xf32>
    %35 = vector.broadcast %34 : vector<1x1156xf32> to vector<8x1156xf32>
    %36 = arith.mulf %26, %35 : vector<8x1156xf32>
    %37 = tpu.iota {dimensions = array<i32: 1>} : vector<1x1156xi32>
    %38 = tpu.iota {dimensions = array<i32: 1>} : vector<1x34xi32>
    %39 = tpu.concatenate %38, %38 in 1 : vector<1x34xi32>, vector<1x34xi32> -> vector<1x68xi32>
    %40 = tpu.concatenate %39, %39 in 1 : vector<1x68xi32>, vector<1x68xi32> -> vector<1x136xi32>
    %41 = tpu.concatenate %40, %40 in 1 : vector<1x136xi32>, vector<1x136xi32> -> vector<1x272xi32>
    %42 = tpu.concatenate %41, %41 in 1 : vector<1x272xi32>, vector<1x272xi32> -> vector<1x544xi32>
    %43 = tpu.concatenate %42, %42 in 1 : vector<1x544xi32>, vector<1x544xi32> -> vector<1x1088xi32>
    %44 = tpu.concatenate %43, %43 in 1 : vector<1x1088xi32>, vector<1x1088xi32> -> vector<1x2176xi32>
    %45 = vector.extract_strided_slice %44 {offsets = [0, 0], sizes = [1, 1156], strides = [1, 1]} : vector<1x2176xi32> to vector<1x1156xi32>
    %c32_i32 = arith.constant 32 : i32
    %46 = vector.broadcast %c32_i32 : i32 to vector<1x1156xi32>
    %47 = arith.cmpi slt, %45, %46 : vector<1x1156xi32>
    %c0_i32 = arith.constant 0 : i32
    %48 = arith.cmpi eq, %arg1, %c0_i32 : i32
    %c34_i32 = arith.constant 34 : i32
    %c0_i32_24 = arith.constant 0 : i32
    %49 = arith.select %48, %c34_i32, %c0_i32_24 : i32
    %c0_i32_25 = arith.constant 0 : i32
    %50 = arith.cmpi eq, %arg1, %c0_i32_25 : i32
    %c1122_i32 = arith.constant 1122 : i32
    %c1156_i32 = arith.constant 1156 : i32
    %51 = arith.select %50, %c1122_i32, %c1156_i32 : i32
    %52 = vector.broadcast %49 : i32 to vector<1x1156xi32>
    %53 = arith.cmpi sge, %37, %52 : vector<1x1156xi32>
    %54 = arith.andi %47, %53 : vector<1x1156xi1>
    %55 = vector.broadcast %51 : i32 to vector<1x1156xi32>
    %56 = arith.cmpi slt, %37, %55 : vector<1x1156xi32>
    %57 = arith.andi %54, %56 : vector<1x1156xi1>
    %cst_26 = arith.constant 0.000000e+00 : f32
    %58 = vector.shape_cast %57 : vector<1x1156xi1> to vector<1x1156xi1>
    %59 = vector.broadcast %58 : vector<1x1156xi1> to vector<8x1156xi1>
    %60 = vector.broadcast %cst_26 : f32 to vector<8x1156xf32>
    %61 = arith.select %59, %36, %60 : vector<8x1156xi1>, vector<8x1156xf32>
    %62 = arith.truncf %61 : vector<8x1156xf32> to vector<8x1156xbf16>
    %cst_27 = arith.constant 0.000000e+00 : bf16
    %63 = vector.broadcast %cst_27 : bf16 to vector<8x1xbf16>
    %64 = tpu.concatenate %63, %62, %63 in 1 : vector<8x1xbf16>, vector<8x1156xbf16>, vector<8x1xbf16> -> vector<8x1158xbf16>
    %65 = vector.extract_strided_slice %64 {offsets = [0, 0], sizes = [8, 1090], strides = [1, 1]} : vector<8x1158xbf16> to vector<8x1090xbf16>
    %66 = vector.extract_strided_slice %64 {offsets = [0, 34], sizes = [8, 1090], strides = [1, 1]} : vector<8x1158xbf16> to vector<8x1090xbf16>
    %67 = vector.extract_strided_slice %64 {offsets = [0, 68], sizes = [8, 1090], strides = [1, 1]} : vector<8x1158xbf16> to vector<8x1090xbf16>
    %68 = tpu.concatenate %65, %66, %67 in 0 : vector<8x1090xbf16>, vector<8x1090xbf16>, vector<8x1090xbf16> -> vector<24x1090xbf16>
    %c0_28 = arith.constant 0 : index
    %c0_29 = arith.constant 0 : index
    %c0_30 = arith.constant 0 : index
    %69 = vector.load %arg5[%c0_28, %c0_29, %c0_30] : memref<3x8x24xbf16, #tpu.memory_space<vmem>>, vector<1x8x24xbf16>
    %70 = vector.shape_cast %69 : vector<1x8x24xbf16> to vector<8x24xbf16>
    %71 = vector.extract_strided_slice %68 {offsets = [0, 0], sizes = [24, 1088], strides = [1, 1]} : vector<24x1090xbf16> to vector<24x1088xbf16>
    %cst_31 = arith.constant dense<0.000000e+00> : vector<8x1088xf32>
    %72 = tpu.matmul %70, %71, %cst_31 {dimension_numbers = #tpu.dot_dimension_numbers<[1], [0], [0], [1], [0, 0, 1, 1], [], []>} : vector<8x24xbf16>, vector<24x1088xbf16>, vector<8x1088xf32> -> vector<8x1088xf32>
    %c1_32 = arith.constant 1 : index
    %c0_33 = arith.constant 0 : index
    %c0_34 = arith.constant 0 : index
    %73 = vector.load %arg5[%c1_32, %c0_33, %c0_34] : memref<3x8x24xbf16, #tpu.memory_space<vmem>>, vector<1x8x24xbf16>
    %74 = vector.shape_cast %73 : vector<1x8x24xbf16> to vector<8x24xbf16>
    %75 = vector.extract_strided_slice %68 {offsets = [0, 1], sizes = [24, 1088], strides = [1, 1]} : vector<24x1090xbf16> to vector<24x1088xbf16>
    %cst_35 = arith.constant dense<0.000000e+00> : vector<8x1088xf32>
    %76 = tpu.matmul %74, %75, %cst_35 {dimension_numbers = #tpu.dot_dimension_numbers<[1], [0], [0], [1], [0, 0, 1, 1], [], []>} : vector<8x24xbf16>, vector<24x1088xbf16>, vector<8x1088xf32> -> vector<8x1088xf32>
    %77 = arith.addf %72, %76 : vector<8x1088xf32>
    %c2_36 = arith.constant 2 : index
    %c0_37 = arith.constant 0 : index
    %c0_38 = arith.constant 0 : index
    %78 = vector.load %arg5[%c2_36, %c0_37, %c0_38] : memref<3x8x24xbf16, #tpu.memory_space<vmem>>, vector<1x8x24xbf16>
    %79 = vector.shape_cast %78 : vector<1x8x24xbf16> to vector<8x24xbf16>
    %80 = vector.extract_strided_slice %68 {offsets = [0, 2], sizes = [24, 1088], strides = [1, 1]} : vector<24x1090xbf16> to vector<24x1088xbf16>
    %cst_39 = arith.constant dense<0.000000e+00> : vector<8x1088xf32>
    %81 = tpu.matmul %79, %80, %cst_39 {dimension_numbers = #tpu.dot_dimension_numbers<[1], [0], [0], [1], [0, 0, 1, 1], [], []>} : vector<8x24xbf16>, vector<24x1088xbf16>, vector<8x1088xf32> -> vector<8x1088xf32>
    %82 = arith.addf %77, %81 : vector<8x1088xf32>
    %c0_40 = arith.constant 0 : index
    %c0_41 = arith.constant 0 : index
    %83 = vector.load %arg6[%c0_40, %c0_41] : memref<8x1xf32, #tpu.memory_space<vmem>>, vector<8x1xf32>
    %84 = vector.broadcast %83 : vector<8x1xf32> to vector<8x1088xf32>
    %85 = arith.addf %82, %84 : vector<8x1088xf32>
    %cst_42 = arith.constant 2.000000e-01 : f32
    %86 = vector.broadcast %cst_42 : f32 to vector<8x1088xf32>
    %87 = arith.mulf %86, %85 : vector<8x1088xf32>
    %88 = arith.maximumf %85, %87 : vector<8x1088xf32>
    %89 = arith.mulf %88, %88 : vector<8x1088xf32>
    %cst_43 = arith.constant dense<0.000000e+00> : vector<1088xf32>
    %90 = vector.multi_reduction <add>, %89, %cst_43 [0] : vector<8x1088xf32> to vector<1088xf32>
    %91 = vector.shape_cast %90 : vector<1088xf32> to vector<1x1088xf32>
    %cst_44 = arith.constant 8.000000e+00 : f32
    %92 = vector.broadcast %cst_44 : f32 to vector<1x1088xf32>
    %93 = arith.divf %91, %92 : vector<1x1088xf32>
    %cst_45 = arith.constant 9.99999993E-9 : f32
    %94 = vector.broadcast %cst_45 : f32 to vector<1x1088xf32>
    %95 = arith.addf %93, %94 : vector<1x1088xf32>
    %96 = math.rsqrt %95 : vector<1x1088xf32>
    %97 = vector.broadcast %96 : vector<1x1088xf32> to vector<8x1088xf32>
    %98 = arith.mulf %88, %97 : vector<8x1088xf32>
    %c0_46 = arith.constant 0 : index
    %c0_47 = arith.constant 0 : index
    %c0_48 = arith.constant 0 : index
    %c0_49 = arith.constant 0 : index
    %99 = vector.load %arg7[%c0_46, %c0_47, %c0_48, %c0_49] : memref<1x1x8x1088xf32, #tpu.memory_space<vmem>>, vector<1x1x8x1088xf32>
    %100 = vector.shape_cast %99 : vector<1x1x8x1088xf32> to vector<8x1088xf32>
    %101 = vector.shape_cast %98 : vector<8x1088xf32> to vector<1x1x8x1088xf32>
    tpu.vector_store %arg7[%c0_46, %c0_47, %c0_48, %c0_49], %101 {strides = array<i32>} : memref<1x1x8x1088xf32, #tpu.memory_space<vmem>>, vector<1x1x8x1088xf32>,
    return
  }
  func.func @transform_0(%arg0: i32, %arg1: i32) -> (i32, i32, i32, i32) {
    %c0_i32 = arith.constant 0 : i32
    %c0_i32_0 = arith.constant 0 : i32
    %c0_i32_1 = arith.constant 0 : i32
    return %arg0, %arg1, %c0_i32, %c0_i32_0 : i32, i32, i32, i32
  }
  func.func @transform_1(%arg0: i32, %arg1: i32) -> (i32, i32, i32) {
    %c0_i32 = arith.constant 0 : i32
    %c0_i32_0 = arith.constant 0 : i32
    %c0_i32_1 = arith.constant 0 : i32
    %c0_i32_2 = arith.constant 0 : i32
    return %c0_i32, %c0_i32_0, %c0_i32_1 : i32, i32, i32
  }
  func.func @transform_2(%arg0: i32, %arg1: i32) -> (i32, i32) {
    %c0_i32 = arith.constant 0 : i32
    %c0_i32_0 = arith.constant 0 : i32
    %c0_i32_1 = arith.constant 0 : i32
    return %c0_i32, %c0_i32_0 : i32, i32
  }
  func.func @transform_3(%arg0: i32, %arg1: i32) -> (i32, i32, i32) {
    %c0_i32 = arith.constant 0 : i32
    %c0_i32_0 = arith.constant 0 : i32
    %c0_i32_1 = arith.constant 0 : i32
    %c0_i32_2 = arith.constant 0 : i32
    return %c0_i32, %c0_i32_0, %c0_i32_1 : i32, i32, i32
  }
  func.func @transform_4(%arg0: i32, %arg1: i32) -> (i32, i32) {
    %c0_i32 = arith.constant 0 : i32
    %c0_i32_0 = arith.constant 0 : i32
    %c0_i32_1 = arith.constant 0 : i32
    return %c0_i32, %c0_i32_0 : i32, i32
  }
  func.func @transform_5(%arg0: i32, %arg1: i32) -> (i32, i32, i32, i32) {
    %c0_i32 = arith.constant 0 : i32
    %c0_i32_0 = arith.constant 0 : i32
    %c0_i32_1 = arith.constant 0 : i32
    return %arg0, %arg1, %c0_i32, %c0_i32_0 : i32, i32, i32, i32
  }
}

</mosaic_0001>

<llo_original>
// kernel: tpu_custom_call.1
$region0: #{tpu_custom_call.1}
  #allocation0 [shape = 'u32[]', space=smem, size = 0x4, offset = 0x4, fixed_abs, tag = 'smem constant byte address 0x4 - core index']
  #allocation1 [shape = 'u32[144,128]{1,0:T(1,128)}', space=vmem, size = 0x12000, scoped, tag = 'internal scratch']
  %s0 = inlined_call_operand.hbm [shape: bf16[2,1,4,1226], index: 0, kind: input, shape index: {}]
  %s1 = inlined_call_operand.vmem [shape: bf16[3,8,12], index: 1, kind: input, shape index: {}]
  %s2 = inlined_call_operand.vmem [shape: f32[8,1], index: 2, kind: input, shape index: {}]
  %s3 = inlined_call_operand.vmem [shape: bf16[3,8,24], index: 3, kind: input, shape index: {}]
  %s4 = inlined_call_operand.vmem [shape: f32[8,1], index: 4, kind: input, shape index: {}]
  %s5 = inlined_call_operand.hbm [shape: f32[2,1,8,1088], index: 5, kind: output, shape index: {}]
  %s6 = sld [smem:[#allocation0]]
  $region57: #{tpu_custom_call.1} parent=0
    _
  %s8 = ssub.s32 1, %s6
  %s9 = scalar_select 0, %s8, %s6
  $region1: #{tpu_custom_call.1} parent=0
    #allocation2 [shape = 'u8[20480]{0}', space=vmem, size = 0x5000, scoped, tag = 'input window, operand 0']
    #allocation3 [shape = 's32[2]{0}', space=sflag, size = 0x8, scoped, tag = 'scoped memory for tpu_custom_call.1']
    #allocation4 [shape = 's32[2]{0}', space=sflag, size = 0x8, scoped, tag = 'scoped memory for tpu_custom_call.1']
    #allocation5 [shape = 'u8[73728]{0}', space=vmem, size = 0x12000, scoped, tag = 'output window, operand 0']
    %10 = vsyncpa [#allocation3], 0
    %s11 = scalar_lea.sflag [#allocation3], 1
    %12 = vsyncpa %s11, 0
    %13 = vsyncpa [#allocation4], 0
    %s14 = scalar_lea.sflag [#allocation4], 1
    %15 = vsyncpa %s14, 0
    loop: start=0, step=1, limit=4
    $region2: #{tpu_custom_call.1} parent=1 // loop_pre_header
      _
    $region3: #{tpu_custom_call.1} parent=1 // loop_header
      %s17 = sphi 0, %s21
      %p18 = scmp.ge.s32.totalorder %s17, 4
      %s24 = sphi 0, %s36
      %s25 = sphi 0, %s32
      %s26 = sphi 0, %s24
      %s27 = sphi 0, %s25
      %s28 = sphi 0, %s26
      %s29 = sphi 0, %s27
      %s41 = sphi 0, %s43
      %s44 = sphi 0, %s41
      %s45 = sphi 0, %s44
      %s61 = sphi 0, %s45
      %s65 = sphi 0, %s65
      %s67 = sphi 0, %s65
      %s68 = sphi 0, %s67
      %s82 = sphi 0, %s68
      %s86 = sphi 0, %s86
      %s88 = sphi 0, %s86
      %s89 = sphi 0, %s88
      %s103 = sphi 0, %s89
      %s107 = sphi 0, %s107
      %s109 = sphi 0, %s107
      %s110 = sphi 0, %s109
      %s124 = sphi 0, %s110
      %s128 = sphi 0, %s128
      %s130 = sphi 0, %s128
      %s131 = sphi 0, %s130
      %s145 = sphi 0, %s131
      %s153 = sphi 0, %s155
      %s156 = sphi 0, %s153
      %s157 = sphi 0, %s156
      %s173 = sphi 0, %s157
    $region4: #{tpu_custom_call.1} parent=1 // loop_header_branch
      %20 = sbr.rel (%p18) target = $region8
    $region5: #{tpu_custom_call.1} parent=1 // loop_body
      %s22 = ssub.s32 %s17, 1
      %s23 = ssub.s32 %s17, 2
      %s30 = sadd.s32 1, %s25
      %p31 = scmp.ge.s32.totalorder %s30, 1
      %s32 = scalar_select %p31, 0, %s30
      %s33 = sadd.s32 1, %s24
      %s34 = scalar_select %p31, %s33, %s24
      %p35 = scmp.ge.s32.totalorder %s34, 2
      %s36 = scalar_select %p35, 0, %s34
      %s37 = ssub.s32 %s24, %s36
      %s38 = ssub.s32 %s25, %s32
      %s39 = sor.u32 %s37, %s38
      %p40 = scmp.eq.s32.totalorder %s39, 0
      %s42 = sadd.s32 %s41, 1
      %s43 = scalar_select %p40, %s41, %s42
      %p46 = pneg %p40
      %p47 = scmp.eq.s32.totalorder %s17, 1
      %p48 = por %p46, %p47
      %p49 = scmp.ne.s32.totalorder %s41, %s44
      %p50 = scmp.eq.s32.totalorder %s17, 0
      %p51 = por %p49, %p50
      %p52 = scmp.ne.s32.totalorder %s41, %s44
      %p53 = scmp.eq.s32.totalorder %s22, 1
      %p54 = por %p52, %p53
      %p55 = scmp.ne.s32.totalorder %s44, %s45
      %p56 = scmp.eq.s32.totalorder %s22, 0
      %p57 = por %p55, %p56
      %p58 = scmp.ne.s32.totalorder %s44, %s45
      %p59 = scmp.eq.s32.totalorder %s23, 1
      %p60 = por %p58, %p59
      %p62 = scmp.ne.s32.totalorder %s45, %s61
      %p63 = scmp.eq.s32.totalorder %s23, 0
      %p64 = por %p62, %p63
      %s66 = sadd.s32 %s65, 1
      %p69 = scmp.eq.s32.totalorder %s17, 1
      %p70 = scmp.ne.s32.totalorder %s65, %s67
      %p71 = scmp.eq.s32.totalorder %s17, 0
      %p72 = por %p70, %p71
      %p73 = scmp.ne.s32.totalorder %s65, %s67
      %p74 = scmp.eq.s32.totalorder %s22, 1
      %p75 = por %p73, %p74
      %p76 = scmp.ne.s32.totalorder %s67, %s68
      %p77 = scmp.eq.s32.totalorder %s22, 0
      %p78 = por %p76, %p77
      %p79 = scmp.ne.s32.totalorder %s67, %s68
      %p80 = scmp.eq.s32.totalorder %s23, 1
      %p81 = por %p79, %p80
      %p83 = scmp.ne.s32.totalorder %s68, %s82
      %p84 = scmp.eq.s32.totalorder %s23, 0
      %p85 = por %p83, %p84
      %s87 = sadd.s32 %s86, 1
      %p90 = scmp.eq.s32.totalorder %s17, 1
      %p91 = scmp.ne.s32.totalorder %s86, %s88
      %p92 = scmp.eq.s32.totalorder %s17, 0
      %p93 = por %p91, %p92
      %p94 = scmp.ne.s32.totalorder %s86, %s88
      %p95 = scmp.eq.s32.totalorder %s22, 1
      %p96 = por %p94, %p95
      %p97 = scmp.ne.s32.totalorder %s88, %s89
      %p98 = scmp.eq.s32.totalorder %s22, 0
      %p99 = por %p97, %p98
      %p100 = scmp.ne.s32.totalorder %s88, %s89
      %p101 = scmp.eq.s32.totalorder %s23, 1
      %p102 = por %p100, %p101
      %p104 = scmp.ne.s32.totalorder %s89, %s103
      %p105 = scmp.eq.s32.totalorder %s23, 0
      %p106 = por %p104, %p105
      %s108 = sadd.s32 %s107, 1
      %p111 = scmp.eq.s32.totalorder %s17, 1
      %p112 = scmp.ne.s32.totalorder %s107, %s109
      %p113 = scmp.eq.s32.totalorder %s17, 0
      %p114 = por %p112, %p113
      %p115 = scmp.ne.s32.totalorder %s107, %s109
      %p116 = scmp.eq.s32.totalorder %s22, 1
      %p117 = por %p115, %p116
      %p118 = scmp.ne.s32.totalorder %s109, %s110
      %p119 = scmp.eq.s32.totalorder %s22, 0
      %p120 = por %p118, %p119
      %p121 = scmp.ne.s32.totalorder %s109, %s110
      %p122 = scmp.eq.s32.totalorder %s23, 1
      %p123 = por %p121, %p122
      %p125 = scmp.ne.s32.totalorder %s110, %s124
      %p126 = scmp.eq.s32.totalorder %s23, 0
      %p127 = por %p125, %p126
      %s129 = sadd.s32 %s128, 1
      %p132 = scmp.eq.s32.totalorder %s17, 1
      %p133 = scmp.ne.s32.totalorder %s128, %s130
      %p134 = scmp.eq.s32.totalorder %s17, 0
      %p135 = por %p133, %p134
      %p136 = scmp.ne.s32.totalorder %s128, %s130
      %p137 = scmp.eq.s32.totalorder %s22, 1
      %p138 = por %p136, %p137
      %p139 = scmp.ne.s32.totalorder %s130, %s131
      %p140 = scmp.eq.s32.totalorder %s22, 0
      %p141 = por %p139, %p140
      %p142 = scmp.ne.s32.totalorder %s130, %s131
      %p143 = scmp.eq.s32.totalorder %s23, 1
      %p144 = por %p142, %p143
      %p146 = scmp.ne.s32.totalorder %s131, %s145
      %p147 = scmp.eq.s32.totalorder %s23, 0
      %p148 = por %p146, %p147
      %s149 = ssub.s32 %s24, %s36
      %s150 = ssub.s32 %s25, %s32
      %s151 = sor.u32 %s149, %s150
      %p152 = scmp.eq.s32.totalorder %s151, 0
      %s154 = sadd.s32 %s153, 1
      %s155 = scalar_select %p152, %s153, %s154
      %p158 = pneg %p152
      %p159 = scmp.eq.s32.totalorder %s17, 1
      %p160 = por %p158, %p159
      %p161 = scmp.ne.s32.totalorder %s153, %s156
      %p162 = scmp.eq.s32.totalorder %s17, 0
      %p163 = por %p161, %p162
      %p164 = scmp.ne.s32.totalorder %s153, %s156
      %p165 = scmp.eq.s32.totalorder %s22, 1
      %p166 = por %p164, %p165
      %p167 = scmp.ne.s32.totalorder %s156, %s157
      %p168 = scmp.eq.s32.totalorder %s22, 0
      %p169 = por %p167, %p168
      %p170 = scmp.ne.s32.totalorder %s156, %s157
      %p171 = scmp.eq.s32.totalorder %s23, 1
      %p172 = por %p170, %p171
      %p174 = scmp.ne.s32.totalorder %s157, %s173
      %p175 = scmp.eq.s32.totalorder %s23, 0
      %p176 = por %p174, %p175
      %p177 = scmp.le.s32.totalorder 1, %s17
      %p178 = scmp.lt.s32.totalorder %s17, 3
      %p179 = pnand %p177, %p178
      %p180 = pneg %p179
      // Predicated region
      $region9: #{tpu_custom_call.1} parent=5 // pred_check
        _
      $region10: #{tpu_custom_call.1} parent=5 // pred_check_branch
        %182 = sbr.rel (%p179) target = $region12
      $region11: #{tpu_custom_call.1} parent=5 // pred_region
        %s183 = ssub.s32 %s17, 1
        // Predicated region
        $region13: #{tpu_custom_call.1} parent=11 // pred_check
          %p184 = pneg %p78
        $region14: #{tpu_custom_call.1} parent=11 // pred_check_branch
          %186 = sbr.rel (%p184) target = $region16
        $region15: #{tpu_custom_call.1} parent=11 // pred_region
          _
        $region16: #{tpu_custom_call.1} parent=11 // pred_fallthru
          _
        // Predicated region
        $region17: #{tpu_custom_call.1} parent=11 // pred_check
          %p187 = pneg %p99
        $region18: #{tpu_custom_call.1} parent=11 // pred_check_branch
          %189 = sbr.rel (%p187) target = $region20
        $region19: #{tpu_custom_call.1} parent=11 // pred_region
          _
        $region20: #{tpu_custom_call.1} parent=11 // pred_fallthru
          _
        // Predicated region
        $region21: #{tpu_custom_call.1} parent=11 // pred_check
          %p190 = pneg %p120
        $region22: #{tpu_custom_call.1} parent=11 // pred_check_branch
          %192 = sbr.rel (%p190) target = $region24
        $region23: #{tpu_custom_call.1} parent=11 // pred_region
          _
        $region24: #{tpu_custom_call.1} parent=11 // pred_fallthru
          _
        // Predicated region
        $region25: #{tpu_custom_call.1} parent=11 // pred_check
          %p193 = pneg %p141
        $region26: #{tpu_custom_call.1} parent=11 // pred_check_branch
          %195 = sbr.rel (%p193) target = $region28
        $region27: #{tpu_custom_call.1} parent=11 // pred_region
          _
        $region28: #{tpu_custom_call.1} parent=11 // pred_fallthru
          _
      $region12: #{tpu_custom_call.1} parent=5 // pred_fallthru
        _
      %p196 = scmp.lt.s32.totalorder %s17, 2
      // Predicated region
      $region29: #{tpu_custom_call.1} parent=5 // pred_check
        %p197 = pneg %p196
      $region30: #{tpu_custom_call.1} parent=5 // pred_check_branch
        %199 = sbr.rel (%p197) target = $region32
      $region31: #{tpu_custom_call.1} parent=5 // pred_region
        // Predicated region
        $region33: #{tpu_custom_call.1} parent=31 // pred_check
          %p200 = pneg %p51
        $region34: #{tpu_custom_call.1} parent=31 // pred_check_branch
          %202 = sbr.rel (%p200) target = $region36
        $region35: #{tpu_custom_call.1} parent=31 // pred_region
          %s203 = sand.u32 %s41, 1
          %s204 = scalar_lea.sflag [#allocation3], %s203
          %s205 = sand.u32 %s41, 1
          %s206 = smul.addr %s205, 20
          %s207 = scalar_lea.vmem [#allocation2], %s206
          %s209 = ssub.s32 320, 320
          %210 = vsyncadd %s204, %s209
          %s211 = smul.addr %s25, 10
          %s212 = smul.addr %s24, 10
          %s213 = sadd.s32 %s211, %s212
          %s214 = smul.addr %s213, 32
          %s215 = scalar_lea.hbm %s0, %s214
          %s217 = sshll.u32 %s207, 4
          %s218 = int_to_ptr.vmem [resolvable:$true] %s217
          %220 = dma.hbm_to_vmem [thread:$0]  %s215, 320, %s218, %s204
        $region36: #{tpu_custom_call.1} parent=31 // pred_fallthru
          _
      $region32: #{tpu_custom_call.1} parent=5 // pred_fallthru
        _
      %p221 = scmp.le.s32.totalorder 1, %s17
      %p222 = scmp.lt.s32.totalorder %s17, 3
      %p223 = pnand %p221, %p222
      %p224 = pneg %p223
      // Predicated region
      $region37: #{tpu_custom_call.1} parent=5 // pred_check
        _
      $region38: #{tpu_custom_call.1} parent=5 // pred_check_branch
        %226 = sbr.rel (%p223) target = $region40
      $region39: #{tpu_custom_call.1} parent=5 // pred_region
        %s227 = ssub.s32 %s17, 1
        %s228 = sand.u32 %s44, 1
        %s229 = scalar_lea.sflag [#allocation3], %s228
        %s230 = sand.u32 %s44, 1
        %s231 = smul.addr %s230, 20
        %s232 = scalar_lea.vmem [#allocation2], %s231
        // Predicated region
        $region41: #{tpu_custom_call.1} parent=39 // pred_check
          %p233 = pneg %p57
        $region42: #{tpu_custom_call.1} parent=39 // pred_check_branch
          %235 = sbr.rel (%p233) target = $region44
        $region43: #{tpu_custom_call.1} parent=39 // pred_region
          %236 = dma.done %s229, 320
        $region44: #{tpu_custom_call.1} parent=39 // pred_fallthru
          _
        %s237 = sand.u32 %s44, 1
        %s238 = scalar_lea.sflag [#allocation3], %s237
        %s239 = sand.u32 %s44, 1
        %s240 = smul.addr %s239, 20
        %s241 = scalar_lea.vmem [#allocation2], %s240
        %p242 = pneg %p57
        %p243 = pneg %p54
        %p244 = pneg %p78
        %p245 = pneg %p75
        %p246 = pneg %p99
        %p247 = pneg %p96
        %p248 = pneg %p120
        %p249 = pneg %p117
        %p250 = pneg %p141
        %p251 = pneg %p138
        %p252 = pneg %p169
        %p253 = pneg %p166
        %s254 = sand.u32 %s156, 1
        %s255 = scalar_lea.sflag [#allocation4], %s254
        %s256 = sand.u32 %s156, 1
        %s257 = smul.addr %s256, 72
        %s258 = scalar_lea.vmem [#allocation5], %s257
        %v260 = vld [vmem:[%s232] sm:$0xff]
        %v261 = vld [vmem:[%s232 + $0x8] sm:$0xff]
        %v262 = vld [vmem:[%s232 + $0x10] sm:$0xf]
        %v266 = vcombine.high %v260, %v260
        %v268 = vunpack.c.l.s4 1983009808
        %v269 = vunpack.c.0.s8 %v268
        %v270 = vlaneseq
        %v271 = vshrl.u32 %v270, 7
        %v272 = vsub.s32 %v269, %v271
        %v273 = vrot.slane %v260, %v272
        %v275 = vunpack.c.l.s4 1983009808
        %v276 = vunpack.c.0.s8 %v275
        %v277 = vlaneseq
        %v278 = vshrl.u32 %v277, 7
        %v279 = vsub.s32 %v276, %v278
        %v280 = vrot.slane %v266, %v279
        %v281 = vcombine.high %v273, %v273
        %v282 = vcombine.high %v280, %v280
        %v283 = vcombine.high %v261, %v261
        %v285 = vunpack.c.l.s4 1983009808
        %v286 = vunpack.c.0.s8 %v285
        %v287 = vlaneseq
        %v288 = vshrl.u32 %v287, 7
        %v289 = vsub.s32 %v286, %v288
        %v290 = vrot.slane %v261, %v289
        %v292 = vunpack.c.l.s4 1983009808
        %v293 = vunpack.c.0.s8 %v292
        %v294 = vlaneseq
        %v295 = vshrl.u32 %v294, 7
        %v296 = vsub.s32 %v293, %v295
        %v297 = vrot.slane %v283, %v296
        %v298 = vcombine.high %v290, %v290
        %v299 = vcombine.high %v297, %v297
        %v301 = vunpack.c.l.s4 1983009808
        %v302 = vunpack.c.0.s8 %v301
        %v303 = vlaneseq
        %v304 = vshrl.u32 %v303, 7
        %v305 = vsub.s32 %v302, %v304
        %v306 = vrot.slane %v262, %v305
        %v307 = vcombine.high %v306, %v306
        %v308 = vcombine.low %v260, %v260
        %v310 = vunpack.c.l.s4 1983009808
        %v311 = vunpack.c.0.s8 %v310
        %v312 = vlaneseq
        %v313 = vshrl.u32 %v312, 7
        %v314 = vsub.s32 %v311, %v313
        %v315 = vrot.slane %v308, %v314
        %v316 = vcombine.high %v315, %v315
        %v317 = vcombine.low %v261, %v261
        %v319 = vunpack.c.l.s4 1983009808
        %v320 = vunpack.c.0.s8 %v319
        %v321 = vlaneseq
        %v322 = vshrl.u32 %v321, 7
        %v323 = vsub.s32 %v320, %v322
        %v324 = vrot.slane %v317, %v323
        %v325 = vcombine.high %v324, %v324
        %v326 = vcombine.low %v262, %v262
        %v328 = vunpack.c.l.s4 1983009808
        %v329 = vunpack.c.0.s8 %v328
        %v330 = vlaneseq
        %v331 = vshrl.u32 %v330, 7
        %v332 = vsub.s32 %v329, %v331
        %v333 = vrot.slane %v326, %v332
        %v334 = vcombine.high %v333, %v333
        %335 = vrot.lane.b32.xlu0 %v315, 94
        %v336 = vpop.permute.xlu0 %335
        %337 = vrot.lane.b32.xlu0 %v316, 94
        %v338 = vpop.permute.xlu0 %337
        %339 = vrot.lane.b32.xlu0 %v273, 94
        %v340 = vpop.permute.xlu0 %339
        %341 = vrot.lane.b32.xlu0 %v281, 94
        %v342 = vpop.permute.xlu0 %341
        %343 = vrot.lane.b32.xlu0 %v324, 94
        %v344 = vpop.permute.xlu0 %343
        %345 = vrot.lane.b32.xlu0 %v325, 94
        %v346 = vpop.permute.xlu0 %345
        %347 = vrot.lane.b32.xlu0 %v290, 94
        %v348 = vpop.permute.xlu0 %347
        %349 = vrot.lane.b32.xlu0 %v298, 94
        %v350 = vpop.permute.xlu0 %349
        %351 = vrot.lane.b32.xlu0 %v333, 94
        %v352 = vpop.permute.xlu0 %351
        %353 = vrot.lane.b32.xlu0 %v334, 94
        %v354 = vpop.permute.xlu0 %353
        %vm355 = vcmask 769024
        %v356 = vsel %vm355, %v336, %v338
        %v357 = vsel %vm355, %v338, %v340
        %v358 = vsel %vm355, %v340, %v342
        %v359 = vsel %vm355, %v342, %v344
        %v360 = vsel %vm355, %v344, %v346
        %v361 = vsel %vm355, %v346, %v348
        %v362 = vsel %vm355, %v348, %v350
        %v363 = vsel %vm355, %v350, %v352
        %v364 = vsel %vm355, %v352, %v354
        %v365 = vcombine.low %v273, %v273
        %v366 = vcombine.low %v280, %v280
        %v367 = vcombine.low %v290, %v290
        %v368 = vcombine.low %v297, %v297
        %v369 = vcombine.low %v306, %v306
        %370 = vrot.lane.b32.xlu0 %v365, 60
        %v371 = vpop.permute.xlu0 %370
        %372 = vrot.lane.b32.xlu0 %v273, 60
        %v373 = vpop.permute.xlu0 %372
        %374 = vrot.lane.b32.xlu0 %v366, 60
        %v375 = vpop.permute.xlu0 %374
        %376 = vrot.lane.b32.xlu0 %v280, 60
        %v377 = vpop.permute.xlu0 %376
        %378 = vrot.lane.b32.xlu0 %v367, 60
        %v379 = vpop.permute.xlu0 %378
        %380 = vrot.lane.b32.xlu0 %v290, 60
        %v381 = vpop.permute.xlu0 %380
        %382 = vrot.lane.b32.xlu0 %v368, 60
        %v383 = vpop.permute.xlu0 %382
        %384 = vrot.lane.b32.xlu0 %v297, 60
        %v385 = vpop.permute.xlu0 %384
        %386 = vrot.lane.b32.xlu0 %v369, 60
        %v387 = vpop.permute.xlu0 %386
        %388 = vrot.lane.b32.xlu0 %v306, 60
        %v389 = vpop.permute.xlu0 %388
        %vm390 = vcmask 490496
        %v391 = vsel %vm390, %v371, %v373
        %v392 = vsel %vm390, %v373, %v375
        %v393 = vsel %vm390, %v375, %v377
        %v394 = vsel %vm390, %v377, %v379
        %v395 = vsel %vm390, %v379, %v381
        %v396 = vsel %vm390, %v381, %v383
        %v397 = vsel %vm390, %v383, %v385
        %v398 = vsel %vm390, %v385, %v387
        %v399 = vsel %vm390, %v387, %v389
        %vm400 = vcmask 1041408
        %v403 = vsel %vm400, %v273, %v356
        %v406 = vsel %vm400, %v281, %v357
        %v409 = vsel %vm400, %v280, %v358
        %v412 = vsel %vm400, %v282, %v359
        %v415 = vsel %vm400, %v290, %v360
        %v418 = vsel %vm400, %v298, %v361
        %v421 = vsel %vm400, %v297, %v362
        %v424 = vsel %vm400, %v299, %v363
        %v427 = vsel %vm400, %v306, %v364
        %v430 = vsel %vm400, %v307, %v354
        %vm431 = vcmask 1043456
        %v433 = vsel %vm431, %v403, %v391
        %v435 = vsel %vm431, %v406, %v392
        %v437 = vsel %vm431, %v409, %v393
        %v439 = vsel %vm431, %v412, %v394
        %v441 = vsel %vm431, %v415, %v395
        %v443 = vsel %vm431, %v418, %v396
        %v445 = vsel %vm431, %v421, %v397
        %v447 = vsel %vm431, %v424, %v398
        %v449 = vsel %vm431, %v427, %v399
        %v451 = vsel %vm431, %v430, %v389
        %v452 = vld [vmem:[%s1] sm:$0xf]
        %s453 = scalar_lea.vmem %s1, 4
        %v454 = vld [vmem:[%s453] sm:$0xf]
        %465 = vrot.lane.b32.xlu0 %v433, 127
        %v466 = vpop.permute.xlu0 %465
        %467 = vrot.lane.b32.xlu0 %v435, 127
        %v468 = vpop.permute.xlu0 %467
        %469 = vrot.lane.b32.xlu0 %v437, 127
        %v470 = vpop.permute.xlu0 %469
        %471 = vrot.lane.b32.xlu0 %v439, 127
        %v472 = vpop.permute.xlu0 %471
        %473 = vrot.lane.b32.xlu0 %v441, 127
        %v474 = vpop.permute.xlu0 %473
        %475 = vrot.lane.b32.xlu0 %v443, 127
        %v476 = vpop.permute.xlu0 %475
        %477 = vrot.lane.b32.xlu0 %v445, 127
        %v478 = vpop.permute.xlu0 %477
        %479 = vrot.lane.b32.xlu0 %v447, 127
        %v480 = vpop.permute.xlu0 %479
        %481 = vrot.lane.b32.xlu0 %v449, 127
        %v482 = vpop.permute.xlu0 %481
        %483 = vrot.lane.b32.xlu0 %v451, 127
        %v484 = vpop.permute.xlu0 %483
        %vm485 = vcmask 1039360
        %v486 = vsel %vm485, %v466, %v468
        %v487 = vsel %vm485, %v468, %v470
        %v488 = vsel %vm485, %v470, %v472
        %v489 = vsel %vm485, %v472, %v474
        %v490 = vsel %vm485, %v474, %v476
        %v491 = vsel %vm485, %v476, %v478
        %v492 = vsel %vm485, %v478, %v480
        %v493 = vsel %vm485, %v480, %v482
        %v494 = vsel %vm485, %v482, %v484
        %vm495 = vcmask 97280
        %v497 = vsel %vm495, %v454, 0
        %vm499 = vcmask 1045504
        %v501 = vsel %vm499, %v486, 0
        %v504 = vsel %vm499, %v487, 0
        %v507 = vsel %vm499, %v488, 0
        %v510 = vsel %vm499, %v489, 0
        %v513 = vsel %vm499, %v490, 0
        %v516 = vsel %vm499, %v491, 0
        %v519 = vsel %vm499, %v492, 0
        %v522 = vsel %vm499, %v493, 0
        %v525 = vsel %vm499, %v494, 0
        %v528 = vsel %vm499, %v484, 0
        %530 = vmatprep.subr.bf16.mxu0 %v504
        %531 = vmatpush1.bf16.msra.mxu0 %v501
        %532 = vmatprep.subr.bf16.mxu0 0
        %533 = vmatpush1.bf16.msra.mxu0 0
        %534 = vmatprep.subr.bf16.mxu0 0
        %535 = vmatpush1.bf16.msra.mxu0 0
        %536 = vmatprep.subr.bf16.mxu0 0
        %537 = vmatpush1.bf16.msra.mxu0 0
        %538 = vmatprep.subr.bf16.mxu0 0
        %539 = vmatpush1.bf16.msra.mxu0 0
        %540 = vmatprep.subr.bf16.mxu0 0
        %541 = vmatpush1.bf16.msra.mxu0 0
        %542 = vmatprep.subr.bf16.mxu0 0
        %543 = vmatpush1.bf16.msra.mxu0 0
        %544 = vmatprep.subr.bf16.mxu0 0
        %545 = vmatpush1.bf16.msra.mxu0 0
        %546 = vmatprep.subr.bf16.mxu0 0
        %547 = vmatpush1.bf16.msra.mxu0 0
        %548 = vmatprep.subr.bf16.mxu0 0
        %549 = vmatpush1.bf16.msra.mxu0 0
        %550 = vmatprep.subr.bf16.mxu0 0
        %551 = vmatpush1.bf16.msra.mxu0 0
        %552 = vmatprep.subr.bf16.mxu0 0
        %553 = vmatpush1.bf16.msra.mxu0 0
        %554 = vmatprep.subr.bf16.mxu0 0
        %555 = vmatpush1.bf16.msra.mxu0 0
        %556 = vmatprep.subr.bf16.mxu0 0
        %557 = vmatpush1.bf16.msra.mxu0 0
        %558 = vmatprep.subr.bf16.mxu0 0
        %559 = vmatpush1.bf16.msra.mxu0 0
        %560 = vmatprep.subr.bf16.mxu0 0
        %561 = vmatpush1.bf16.msra.mxu0 0
        %562 = vmatprep.mubr.bf16.mxu0 0
        %563 = vmatmul.mubr.bf16.gmra.mrb[0].mxu0 %v497
        %v564 = vpop.f32.mrb[0].mxu0
        %v565 = vadd.f32 0.0, %v564
        %v566 = vpop.f32.mrb[0].mxu0
        %v567 = vadd.f32 0.0, %v566
        %v568 = vpop.f32.mrb[0].mxu0
        %v569 = vpop.f32.mrb[0].mxu0
        %570 = vdwg.mxu0
        %571 = vmatprep.subr.bf16.mxu0 %v510
        %572 = vmatpush1.bf16.msra.mxu0 %v507
        %573 = vmatprep.subr.bf16.mxu0 0
        %574 = vmatpush1.bf16.msra.mxu0 0
        %575 = vmatprep.subr.bf16.mxu0 0
        %576 = vmatpush1.bf16.msra.mxu0 0
        %577 = vmatprep.subr.bf16.mxu0 0
        %578 = vmatpush1.bf16.msra.mxu0 0
        %579 = vmatprep.subr.bf16.mxu0 0
        %580 = vmatpush1.bf16.msra.mxu0 0
        %581 = vmatprep.subr.bf16.mxu0 0
        %582 = vmatpush1.bf16.msra.mxu0 0
        %583 = vmatprep.subr.bf16.mxu0 0
        %584 = vmatpush1.bf16.msra.mxu0 0
        %585 = vmatprep.subr.bf16.mxu0 0
        %586 = vmatpush1.bf16.msra.mxu0 0
        %587 = vmatprep.subr.bf16.mxu0 0
        %588 = vmatpush1.bf16.msra.mxu0 0
        %589 = vmatprep.subr.bf16.mxu0 0
        %590 = vmatpush1.bf16.msra.mxu0 0
        %591 = vmatprep.subr.bf16.mxu0 0
        %592 = vmatpush1.bf16.msra.mxu0 0
        %593 = vmatprep.subr.bf16.mxu0 0
        %594 = vmatpush1.bf16.msra.mxu0 0
        %595 = vmatprep.subr.bf16.mxu0 0
        %596 = vmatpush1.bf16.msra.mxu0 0
        %597 = vmatprep.subr.bf16.mxu0 0
        %598 = vmatpush1.bf16.msra.mxu0 0
        %599 = vmatprep.subr.bf16.mxu0 0
        %600 = vmatpush1.bf16.msra.mxu0 0
        %601 = vmatprep.subr.bf16.mxu0 0
        %602 = vmatpush1.bf16.msra.mxu0 0
        %603 = vmatprep.mubr.bf16.mxu0 0
        %604 = vmatmul.mubr.bf16.gmra.mrb[0].mxu0 %v497
        %v605 = vpop.f32.mrb[0].mxu0
        %v606 = vadd.f32 0.0, %v605
        %v607 = vpop.f32.mrb[0].mxu0
        %v608 = vadd.f32 0.0, %v607
        %v609 = vpop.f32.mrb[0].mxu0
        %v610 = vpop.f32.mrb[0].mxu0
        %611 = vdwg.mxu0
        %612 = vmatprep.subr.bf16.mxu0 %v516
        %613 = vmatpush1.bf16.msra.mxu0 %v513
        %614 = vmatprep.subr.bf16.mxu0 0
        %615 = vmatpush1.bf16.msra.mxu0 0
        %616 = vmatprep.subr.bf16.mxu0 0
        %617 = vmatpush1.bf16.msra.mxu0 0
        %618 = vmatprep.subr.bf16.mxu0 0
        %619 = vmatpush1.bf16.msra.mxu0 0
        %620 = vmatprep.subr.bf16.mxu0 0
        %621 = vmatpush1.bf16.msra.mxu0 0
        %622 = vmatprep.subr.bf16.mxu0 0
        %623 = vmatpush1.bf16.msra.mxu0 0
        %624 = vmatprep.subr.bf16.mxu0 0
        %625 = vmatpush1.bf16.msra.mxu0 0
        %626 = vmatprep.subr.bf16.mxu0 0
        %627 = vmatpush1.bf16.msra.mxu0 0
        %628 = vmatprep.subr.bf16.mxu0 0
        %629 = vmatpush1.bf16.msra.mxu0 0
        %630 = vmatprep.subr.bf16.mxu0 0
        %631 = vmatpush1.bf16.msra.mxu0 0
        %632 = vmatprep.subr.bf16.mxu0 0
        %633 = vmatpush1.bf16.msra.mxu0 0
        %634 = vmatprep.subr.bf16.mxu0 0
        %635 = vmatpush1.bf16.msra.mxu0 0
        %636 = vmatprep.subr.bf16.mxu0 0
        %637 = vmatpush1.bf16.msra.mxu0 0
        %638 = vmatprep.subr.bf16.mxu0 0
        %639 = vmatpush1.bf16.msra.mxu0 0
        %640 = vmatprep.subr.bf16.mxu0 0
        %641 = vmatpush1.bf16.msra.mxu0 0
        %642 = vmatprep.subr.bf16.mxu0 0
        %643 = vmatpush1.bf16.msra.mxu0 0
        %644 = vmatprep.mubr.bf16.mxu0 0
        %645 = vmatmul.mubr.bf16.gmra.mrb[0].mxu0 %v497
        %v646 = vpop.f32.mrb[0].mxu0
        %v647 = vadd.f32 0.0, %v646
        %v648 = vpop.f32.mrb[0].mxu0
        %v649 = vadd.f32 0.0, %v648
        %v650 = vpop.f32.mrb[0].mxu0
        %v651 = vpop.f32.mrb[0].mxu0
        %652 = vdwg.mxu0
        %653 = vmatprep.subr.bf16.mxu0 %v522
        %654 = vmatpush1.bf16.msra.mxu0 %v519
        %655 = vmatprep.subr.bf16.mxu0 0
        %656 = vmatpush1.bf16.msra.mxu0 0
        %657 = vmatprep.subr.bf16.mxu0 0
        %658 = vmatpush1.bf16.msra.mxu0 0
        %659 = vmatprep.subr.bf16.mxu0 0
        %660 = vmatpush1.bf16.msra.mxu0 0
        %661 = vmatprep.subr.bf16.mxu0 0
        %662 = vmatpush1.bf16.msra.mxu0 0
        %663 = vmatprep.subr.bf16.mxu0 0
        %664 = vmatpush1.bf16.msra.mxu0 0
        %665 = vmatprep.subr.bf16.mxu0 0
        %666 = vmatpush1.bf16.msra.mxu0 0
        %667 = vmatprep.subr.bf16.mxu0 0
        %668 = vmatpush1.bf16.msra.mxu0 0
        %669 = vmatprep.subr.bf16.mxu0 0
        %670 = vmatpush1.bf16.msra.mxu0 0
        %671 = vmatprep.subr.bf16.mxu0 0
        %672 = vmatpush1.bf16.msra.mxu0 0
        %673 = vmatprep.subr.bf16.mxu0 0
        %674 = vmatpush1.bf16.msra.mxu0 0
        %675 = vmatprep.subr.bf16.mxu0 0
        %676 = vmatpush1.bf16.msra.mxu0 0
        %677 = vmatprep.subr.bf16.mxu0 0
        %678 = vmatpush1.bf16.msra.mxu0 0
        %679 = vmatprep.subr.bf16.mxu0 0
        %680 = vmatpush1.bf16.msra.mxu0 0
        %681 = vmatprep.subr.bf16.mxu0 0
        %682 = vmatpush1.bf16.msra.mxu0 0
        %683 = vmatprep.subr.bf16.mxu0 0
        %684 = vmatpush1.bf16.msra.mxu0 0
        %685 = vmatprep.mubr.bf16.mxu0 0
        %686 = vmatmul.mubr.bf16.gmra.mrb[0].mxu0 %v497
        %v687 = vpop.f32.mrb[0].mxu0
        %v688 = vadd.f32 0.0, %v687
        %v689 = vpop.f32.mrb[0].mxu0
        %v690 = vadd.f32 0.0, %v689
        %v691 = vpop.f32.mrb[0].mxu0
        %v692 = vpop.f32.mrb[0].mxu0
        %693 = vdwg.mxu0
        %694 = vmatprep.subr.bf16.mxu0 %v528
        %695 = vmatpush1.bf16.msra.mxu0 %v525
        %696 = vmatprep.subr.bf16.mxu0 0
        %697 = vmatpush1.bf16.msra.mxu0 0
        %698 = vmatprep.subr.bf16.mxu0 0
        %699 = vmatpush1.bf16.msra.mxu0 0
        %700 = vmatprep.subr.bf16.mxu0 0
        %701 = vmatpush1.bf16.msra.mxu0 0
        %702 = vmatprep.subr.bf16.mxu0 0
        %703 = vmatpush1.bf16.msra.mxu0 0
        %704 = vmatprep.subr.bf16.mxu0 0
        %705 = vmatpush1.bf16.msra.mxu0 0
        %706 = vmatprep.subr.bf16.mxu0 0
        %707 = vmatpush1.bf16.msra.mxu0 0
        %708 = vmatprep.subr.bf16.mxu0 0
        %709 = vmatpush1.bf16.msra.mxu0 0
        %710 = vmatprep.subr.bf16.mxu0 0
        %711 = vmatpush1.bf16.msra.mxu0 0
        %712 = vmatprep.subr.bf16.mxu0 0
        %713 = vmatpush1.bf16.msra.mxu0 0
        %714 = vmatprep.subr.bf16.mxu0 0
        %715 = vmatpush1.bf16.msra.mxu0 0
        %716 = vmatprep.subr.bf16.mxu0 0
        %717 = vmatpush1.bf16.msra.mxu0 0
        %718 = vmatprep.subr.bf16.mxu0 0
        %719 = vmatpush1.bf16.msra.mxu0 0
        %720 = vmatprep.subr.bf16.mxu0 0
        %721 = vmatpush1.bf16.msra.mxu0 0
        %722 = vmatprep.subr.bf16.mxu0 0
        %723 = vmatpush1.bf16.msra.mxu0 0
        %724 = vmatprep.subr.bf16.mxu0 0
        %725 = vmatpush1.bf16.msra.mxu0 0
        %726 = vmatprep.mubr.bf16.mxu0 0
        %727 = vmatmul.mubr.bf16.gmra.mrb[0].mxu0 %v497
        %v728 = vpop.f32.mrb[0].mxu0
        %v729 = vadd.f32 0.0, %v728
        %v730 = vpop.f32.mrb[0].mxu0
        %v731 = vadd.f32 0.0, %v730
        %v732 = vpop.f32.mrb[0].mxu0
        %v733 = vpop.f32.mrb[0].mxu0
        %734 = vdwg.mxu0
        %v736 = vsel %vm495, %v452, 0
        %v738 = vsel %vm499, %v433, 0
        %v740 = vsel %vm499, %v435, 0
        %v742 = vsel %vm499, %v437, 0
        %v744 = vsel %vm499, %v439, 0
        %v746 = vsel %vm499, %v441, 0
        %v748 = vsel %vm499, %v443, 0
        %v750 = vsel %vm499, %v445, 0
        %v752 = vsel %vm499, %v447, 0
        %v754 = vsel %vm499, %v449, 0
        %v756 = vsel %vm499, %v451, 0
        %758 = vmatprep.subr.bf16.mxu0 %v740
        %759 = vmatpush1.bf16.msra.mxu0 %v738
        %760 = vmatprep.subr.bf16.mxu0 0
        %761 = vmatpush1.bf16.msra.mxu0 0
        %762 = vmatprep.subr.bf16.mxu0 0
        %763 = vmatpush1.bf16.msra.mxu0 0
        %764 = vmatprep.subr.bf16.mxu0 0
        %765 = vmatpush1.bf16.msra.mxu0 0
        %766 = vmatprep.subr.bf16.mxu0 0
        %767 = vmatpush1.bf16.msra.mxu0 0
        %768 = vmatprep.subr.bf16.mxu0 0
        %769 = vmatpush1.bf16.msra.mxu0 0
        %770 = vmatprep.subr.bf16.mxu0 0
        %771 = vmatpush1.bf16.msra.mxu0 0
        %772 = vmatprep.subr.bf16.mxu0 0
        %773 = vmatpush1.bf16.msra.mxu0 0
        %774 = vmatprep.subr.bf16.mxu0 0
        %775 = vmatpush1.bf16.msra.mxu0 0
        %776 = vmatprep.subr.bf16.mxu0 0
        %777 = vmatpush1.bf16.msra.mxu0 0
        %778 = vmatprep.subr.bf16.mxu0 0
        %779 = vmatpush1.bf16.msra.mxu0 0
        %780 = vmatprep.subr.bf16.mxu0 0
        %781 = vmatpush1.bf16.msra.mxu0 0
        %782 = vmatprep.subr.bf16.mxu0 0
        %783 = vmatpush1.bf16.msra.mxu0 0
        %784 = vmatprep.subr.bf16.mxu0 0
        %785 = vmatpush1.bf16.msra.mxu0 0
        %786 = vmatprep.subr.bf16.mxu0 0
        %787 = vmatpush1.bf16.msra.mxu0 0
        %788 = vmatprep.subr.bf16.mxu0 0
        %789 = vmatpush1.bf16.msra.mxu0 0
        %790 = vmatprep.mubr.bf16.mxu0 0
        %791 = vmatmul.mubr.bf16.gmra.mrb[0].mxu0 %v736
        %v792 = vpop.f32.mrb[0].mxu0
        %v793 = vadd.f32 %v565, %v792
        %v794 = vpop.f32.mrb[0].mxu0
        %v795 = vadd.f32 %v567, %v794
        %v796 = vpop.f32.mrb[0].mxu0
        %v797 = vpop.f32.mrb[0].mxu0
        %798 = vdwg.mxu0
        %799 = vmatprep.subr.bf16.mxu0 %v744
        %800 = vmatpush1.bf16.msra.mxu0 %v742
        %801 = vmatprep.subr.bf16.mxu0 0
        %802 = vmatpush1.bf16.msra.mxu0 0
        %803 = vmatprep.subr.bf16.mxu0 0
        %804 = vmatpush1.bf16.msra.mxu0 0
        %805 = vmatprep.subr.bf16.mxu0 0
        %806 = vmatpush1.bf16.msra.mxu0 0
        %807 = vmatprep.subr.bf16.mxu0 0
        %808 = vmatpush1.bf16.msra.mxu0 0
        %809 = vmatprep.subr.bf16.mxu0 0
        %810 = vmatpush1.bf16.msra.mxu0 0
        %811 = vmatprep.subr.bf16.mxu0 0
        %812 = vmatpush1.bf16.msra.mxu0 0
        %813 = vmatprep.subr.bf16.mxu0 0
        %814 = vmatpush1.bf16.msra.mxu0 0
        %815 = vmatprep.subr.bf16.mxu0 0
        %816 = vmatpush1.bf16.msra.mxu0 0
        %817 = vmatprep.subr.bf16.mxu0 0
        %818 = vmatpush1.bf16.msra.mxu0 0
        %819 = vmatprep.subr.bf16.mxu0 0
        %820 = vmatpush1.bf16.msra.mxu0 0
        %821 = vmatprep.subr.bf16.mxu0 0
        %822 = vmatpush1.bf16.msra.mxu0 0
        %823 = vmatprep.subr.bf16.mxu0 0
        %824 = vmatpush1.bf16.msra.mxu0 0
        %825 = vmatprep.subr.bf16.mxu0 0
        %826 = vmatpush1.bf16.msra.mxu0 0
        %827 = vmatprep.subr.bf16.mxu0 0
        %828 = vmatpush1.bf16.msra.mxu0 0
        %829 = vmatprep.subr.bf16.mxu0 0
        %830 = vmatpush1.bf16.msra.mxu0 0
        %831 = vmatprep.mubr.bf16.mxu0 0
        %832 = vmatmul.mubr.bf16.gmra.mrb[0].mxu0 %v736
        %v833 = vpop.f32.mrb[0].mxu0
        %v834 = vadd.f32 %v606, %v833
        %v835 = vpop.f32.mrb[0].mxu0
        %v836 = vadd.f32 %v608, %v835
        %v837 = vpop.f32.mrb[0].mxu0
        %v838 = vpop.f32.mrb[0].mxu0
        %839 = vdwg.mxu0
        %840 = vmatprep.subr.bf16.mxu0 %v748
        %841 = vmatpush1.bf16.msra.mxu0 %v746
        %842 = vmatprep.subr.bf16.mxu0 0
        %843 = vmatpush1.bf16.msra.mxu0 0
        %844 = vmatprep.subr.bf16.mxu0 0
        %845 = vmatpush1.bf16.msra.mxu0 0
        %846 = vmatprep.subr.bf16.mxu0 0
        %847 = vmatpush1.bf16.msra.mxu0 0
        %848 = vmatprep.subr.bf16.mxu0 0
        %849 = vmatpush1.bf16.msra.mxu0 0
        %850 = vmatprep.subr.bf16.mxu0 0
        %851 = vmatpush1.bf16.msra.mxu0 0
        %852 = vmatprep.subr.bf16.mxu0 0
        %853 = vmatpush1.bf16.msra.mxu0 0
        %854 = vmatprep.subr.bf16.mxu0 0
        %855 = vmatpush1.bf16.msra.mxu0 0
        %856 = vmatprep.subr.bf16.mxu0 0
        %857 = vmatpush1.bf16.msra.mxu0 0
        %858 = vmatprep.subr.bf16.mxu0 0
        %859 = vmatpush1.bf16.msra.mxu0 0
        %860 = vmatprep.subr.bf16.mxu0 0
        %861 = vmatpush1.bf16.msra.mxu0 0
        %862 = vmatprep.subr.bf16.mxu0 0
        %863 = vmatpush1.bf16.msra.mxu0 0
        %864 = vmatprep.subr.bf16.mxu0 0
        %865 = vmatpush1.bf16.msra.mxu0 0
        %866 = vmatprep.subr.bf16.mxu0 0
        %867 = vmatpush1.bf16.msra.mxu0 0
        %868 = vmatprep.subr.bf16.mxu0 0
        %869 = vmatpush1.bf16.msra.mxu0 0
        %870 = vmatprep.subr.bf16.mxu0 0
        %871 = vmatpush1.bf16.msra.mxu0 0
        %872 = vmatprep.mubr.bf16.mxu0 0
        %873 = vmatmul.mubr.bf16.gmra.mrb[0].mxu0 %v736
        %v874 = vpop.f32.mrb[0].mxu0
        %v875 = vadd.f32 %v647, %v874
        %v876 = vpop.f32.mrb[0].mxu0
        %v877 = vadd.f32 %v649, %v876
        %v878 = vpop.f32.mrb[0].mxu0
        %v879 = vpop.f32.mrb[0].mxu0
        %880 = vdwg.mxu0
        %881 = vmatprep.subr.bf16.mxu0 %v752
        %882 = vmatpush1.bf16.msra.mxu0 %v750
        %883 = vmatprep.subr.bf16.mxu0 0
        %884 = vmatpush1.bf16.msra.mxu0 0
        %885 = vmatprep.subr.bf16.mxu0 0
        %886 = vmatpush1.bf16.msra.mxu0 0
        %887 = vmatprep.subr.bf16.mxu0 0
        %888 = vmatpush1.bf16.msra.mxu0 0
        %889 = vmatprep.subr.bf16.mxu0 0
        %890 = vmatpush1.bf16.msra.mxu0 0
        %891 = vmatprep.subr.bf16.mxu0 0
        %892 = vmatpush1.bf16.msra.mxu0 0
        %893 = vmatprep.subr.bf16.mxu0 0
        %894 = vmatpush1.bf16.msra.mxu0 0
        %895 = vmatprep.subr.bf16.mxu0 0
        %896 = vmatpush1.bf16.msra.mxu0 0
        %897 = vmatprep.subr.bf16.mxu0 0
        %898 = vmatpush1.bf16.msra.mxu0 0
        %899 = vmatprep.subr.bf16.mxu0 0
        %900 = vmatpush1.bf16.msra.mxu0 0
        %901 = vmatprep.subr.bf16.mxu0 0
        %902 = vmatpush1.bf16.msra.mxu0 0
        %903 = vmatprep.subr.bf16.mxu0 0
        %904 = vmatpush1.bf16.msra.mxu0 0
        %905 = vmatprep.subr.bf16.mxu0 0
        %906 = vmatpush1.bf16.msra.mxu0 0
        %907 = vmatprep.subr.bf16.mxu0 0
        %908 = vmatpush1.bf16.msra.mxu0 0
        %909 = vmatprep.subr.bf16.mxu0 0
        %910 = vmatpush1.bf16.msra.mxu0 0
        %911 = vmatprep.subr.bf16.mxu0 0
        %912 = vmatpush1.bf16.msra.mxu0 0
        %913 = vmatprep.mubr.bf16.mxu0 0
        %914 = vmatmul.mubr.bf16.gmra.mrb[0].mxu0 %v736
        %v915 = vpop.f32.mrb[0].mxu0
        %v916 = vadd.f32 %v688, %v915
        %v917 = vpop.f32.mrb[0].mxu0
        %v918 = vadd.f32 %v690, %v917
        %v919 = vpop.f32.mrb[0].mxu0
        %v920 = vpop.f32.mrb[0].mxu0
        %921 = vdwg.mxu0
        %922 = vmatprep.subr.bf16.mxu0 %v756
        %923 = vmatpush1.bf16.msra.mxu0 %v754
        %924 = vmatprep.subr.bf16.mxu0 0
        %925 = vmatpush1.bf16.msra.mxu0 0
        %926 = vmatprep.subr.bf16.mxu0 0
        %927 = vmatpush1.bf16.msra.mxu0 0
        %928 = vmatprep.subr.bf16.mxu0 0
        %929 = vmatpush1.bf16.msra.mxu0 0
        %930 = vmatprep.subr.bf16.mxu0 0
        %931 = vmatpush1.bf16.msra.mxu0 0
        %932 = vmatprep.subr.bf16.mxu0 0
        %933 = vmatpush1.bf16.msra.mxu0 0
        %934 = vmatprep.subr.bf16.mxu0 0
        %935 = vmatpush1.bf16.msra.mxu0 0
        %936 = vmatprep.subr.bf16.mxu0 0
        %937 = vmatpush1.bf16.msra.mxu0 0
        %938 = vmatprep.subr.bf16.mxu0 0
        %939 = vmatpush1.bf16.msra.mxu0 0
        %940 = vmatprep.subr.bf16.mxu0 0
        %941 = vmatpush1.bf16.msra.mxu0 0
        %942 = vmatprep.subr.bf16.mxu0 0
        %943 = vmatpush1.bf16.msra.mxu0 0
        %944 = vmatprep.subr.bf16.mxu0 0
        %945 = vmatpush1.bf16.msra.mxu0 0
        %946 = vmatprep.subr.bf16.mxu0 0
        %947 = vmatpush1.bf16.msra.mxu0 0
        %948 = vmatprep.subr.bf16.mxu0 0
        %949 = vmatpush1.bf16.msra.mxu0 0
        %950 = vmatprep.subr.bf16.mxu0 0
        %951 = vmatpush1.bf16.msra.mxu0 0
        %952 = vmatprep.subr.bf16.mxu0 0
        %953 = vmatpush1.bf16.msra.mxu0 0
        %954 = vmatprep.mubr.bf16.mxu0 0
        %955 = vmatmul.mubr.bf16.gmra.mrb[0].mxu0 %v736
        %v956 = vpop.f32.mrb[0].mxu0
        %v957 = vadd.f32 %v729, %v956
        %v958 = vpop.f32.mrb[0].mxu0
        %v959 = vadd.f32 %v731, %v958
        %v960 = vpop.f32.mrb[0].mxu0
        %v961 = vpop.f32.mrb[0].mxu0
        %962 = vdwg.mxu0
        %s963 = scalar_lea.vmem %s1, 8
        %v964 = vld [vmem:[%s963] sm:$0xf]
        %965 = vrot.lane.b32.xlu0 %v433, 126
        %v966 = vpop.permute.xlu0 %965
        %967 = vrot.lane.b32.xlu0 %v435, 126
        %v968 = vpop.permute.xlu0 %967
        %969 = vrot.lane.b32.xlu0 %v437, 126
        %v970 = vpop.permute.xlu0 %969
        %971 = vrot.lane.b32.xlu0 %v439, 126
        %v972 = vpop.permute.xlu0 %971
        %973 = vrot.lane.b32.xlu0 %v441, 126
        %v974 = vpop.permute.xlu0 %973
        %975 = vrot.lane.b32.xlu0 %v443, 126
        %v976 = vpop.permute.xlu0 %975
        %977 = vrot.lane.b32.xlu0 %v445, 126
        %v978 = vpop.permute.xlu0 %977
        %979 = vrot.lane.b32.xlu0 %v447, 126
        %v980 = vpop.permute.xlu0 %979
        %981 = vrot.lane.b32.xlu0 %v449, 126
        %v982 = vpop.permute.xlu0 %981
        %983 = vrot.lane.b32.xlu0 %v451, 126
        %v984 = vpop.permute.xlu0 %983
        %vm985 = vcmask 1031168
        %v986 = vsel %vm985, %v966, %v968
        %v987 = vsel %vm985, %v968, %v970
        %v988 = vsel %vm985, %v970, %v972
        %v989 = vsel %vm985, %v972, %v974
        %v990 = vsel %vm985, %v974, %v976
        %v991 = vsel %vm985, %v976, %v978
        %v992 = vsel %vm985, %v978, %v980
        %v993 = vsel %vm985, %v980, %v982
        %v994 = vsel %vm985, %v982, %v984
        %v996 = vsel %vm495, %v964, 0
        %v999 = vsel %vm499, %v986, 0
        %v1002 = vsel %vm499, %v987, 0
        %v1005 = vsel %vm499, %v988, 0
        %v1008 = vsel %vm499, %v989, 0
        %v1011 = vsel %vm499, %v990, 0
        %v1014 = vsel %vm499, %v991, 0
        %v1017 = vsel %vm499, %v992, 0
        %v1020 = vsel %vm499, %v993, 0
        %v1023 = vsel %vm499, %v994, 0
        %v1026 = vsel %vm499, %v984, 0
        %1028 = vmatprep.subr.bf16.mxu0 %v1002
        %1029 = vmatpush1.bf16.msra.mxu0 %v999
        %1030 = vmatprep.subr.bf16.mxu0 0
        %1031 = vmatpush1.bf16.msra.mxu0 0
        %1032 = vmatprep.subr.bf16.mxu0 0
        %1033 = vmatpush1.bf16.msra.mxu0 0
        %1034 = vmatprep.subr.bf16.mxu0 0
        %1035 = vmatpush1.bf16.msra.mxu0 0
        %1036 = vmatprep.subr.bf16.mxu0 0
        %1037 = vmatpush1.bf16.msra.mxu0 0
        %1038 = vmatprep.subr.bf16.mxu0 0
        %1039 = vmatpush1.bf16.msra.mxu0 0
        %1040 = vmatprep.subr.bf16.mxu0 0
        %1041 = vmatpush1.bf16.msra.mxu0 0
        %1042 = vmatprep.subr.bf16.mxu0 0
        %1043 = vmatpush1.bf16.msra.mxu0 0
        %1044 = vmatprep.subr.bf16.mxu0 0
        %1045 = vmatpush1.bf16.msra.mxu0 0
        %1046 = vmatprep.subr.bf16.mxu0 0
        %1047 = vmatpush1.bf16.msra.mxu0 0
        %1048 = vmatprep.subr.bf16.mxu0 0
        %1049 = vmatpush1.bf16.msra.mxu0 0
        %1050 = vmatprep.subr.bf16.mxu0 0
        %1051 = vmatpush1.bf16.msra.mxu0 0
        %1052 = vmatprep.subr.bf16.mxu0 0
        %1053 = vmatpush1.bf16.msra.mxu0 0
        %1054 = vmatprep.subr.bf16.mxu0 0
        %1055 = vmatpush1.bf16.msra.mxu0 0
        %1056 = vmatprep.subr.bf16.mxu0 0
        %1057 = vmatpush1.bf16.msra.mxu0 0
        %1058 = vmatprep.subr.bf16.mxu0 0
        %1059 = vmatpush1.bf16.msra.mxu0 0
        %1060 = vmatprep.mubr.bf16.mxu0 0
        %1061 = vmatmul.mubr.bf16.gmra.mrb[0].mxu0 %v996
        %v1062 = vpop.f32.mrb[0].mxu0
        %v1063 = vadd.f32 0.0, %v1062
        %v1064 = vpop.f32.mrb[0].mxu0
        %v1065 = vadd.f32 0.0, %v1064
        %v1066 = vpop.f32.mrb[0].mxu0
        %v1067 = vpop.f32.mrb[0].mxu0
        %1068 = vdwg.mxu0
        %1069 = vmatprep.subr.bf16.mxu0 %v1008
        %1070 = vmatpush1.bf16.msra.mxu0 %v1005
        %1071 = vmatprep.subr.bf16.mxu0 0
        %1072 = vmatpush1.bf16.msra.mxu0 0
        %1073 = vmatprep.subr.bf16.mxu0 0
        %1074 = vmatpush1.bf16.msra.mxu0 0
        %1075 = vmatprep.subr.bf16.mxu0 0
        %1076 = vmatpush1.bf16.msra.mxu0 0
        %1077 = vmatprep.subr.bf16.mxu0 0
        %1078 = vmatpush1.bf16.msra.mxu0 0
        %1079 = vmatprep.subr.bf16.mxu0 0
        %1080 = vmatpush1.bf16.msra.mxu0 0
        %1081 = vmatprep.subr.bf16.mxu0 0
        %1082 = vmatpush1.bf16.msra.mxu0 0
        %1083 = vmatprep.subr.bf16.mxu0 0
        %1084 = vmatpush1.bf16.msra.mxu0 0
        %1085 = vmatprep.subr.bf16.mxu0 0
        %1086 = vmatpush1.bf16.msra.mxu0 0
        %1087 = vmatprep.subr.bf16.mxu0 0
        %1088 = vmatpush1.bf16.msra.mxu0 0
        %1089 = vmatprep.subr.bf16.mxu0 0
        %1090 = vmatpush1.bf16.msra.mxu0 0
        %1091 = vmatprep.subr.bf16.mxu0 0
        %1092 = vmatpush1.bf16.msra.mxu0 0
        %1093 = vmatprep.subr.bf16.mxu0 0
        %1094 = vmatpush1.bf16.msra.mxu0 0
        %1095 = vmatprep.subr.bf16.mxu0 0
        %1096 = vmatpush1.bf16.msra.mxu0 0
        %1097 = vmatprep.subr.bf16.mxu0 0
        %1098 = vmatpush1.bf16.msra.mxu0 0
        %1099 = vmatprep.subr.bf16.mxu0 0
        %1100 = vmatpush1.bf16.msra.mxu0 0
        %1101 = vmatprep.mubr.bf16.mxu0 0
        %1102 = vmatmul.mubr.bf16.gmra.mrb[0].mxu0 %v996
        %v1103 = vpop.f32.mrb[0].mxu0
        %v1104 = vadd.f32 0.0, %v1103
        %v1105 = vpop.f32.mrb[0].mxu0
        %v1106 = vadd.f32 0.0, %v1105
        %v1107 = vpop.f32.mrb[0].mxu0
        %v1108 = vpop.f32.mrb[0].mxu0
        %1109 = vdwg.mxu0
        %1110 = vmatprep.subr.bf16.mxu0 %v1014
        %1111 = vmatpush1.bf16.msra.mxu0 %v1011
        %1112 = vmatprep.subr.bf16.mxu0 0
        %1113 = vmatpush1.bf16.msra.mxu0 0
        %1114 = vmatprep.subr.bf16.mxu0 0
        %1115 = vmatpush1.bf16.msra.mxu0 0
        %1116 = vmatprep.subr.bf16.mxu0 0
        %1117 = vmatpush1.bf16.msra.mxu0 0
        %1118 = vmatprep.subr.bf16.mxu0 0
        %1119 = vmatpush1.bf16.msra.mxu0 0
        %1120 = vmatprep.subr.bf16.mxu0 0
        %1121 = vmatpush1.bf16.msra.mxu0 0
        %1122 = vmatprep.subr.bf16.mxu0 0
        %1123 = vmatpush1.bf16.msra.mxu0 0
        %1124 = vmatprep.subr.bf16.mxu0 0
        %1125 = vmatpush1.bf16.msra.mxu0 0
        %1126 = vmatprep.subr.bf16.mxu0 0
        %1127 = vmatpush1.bf16.msra.mxu0 0
        %1128 = vmatprep.subr.bf16.mxu0 0
        %1129 = vmatpush1.bf16.msra.mxu0 0
        %1130 = vmatprep.subr.bf16.mxu0 0
        %1131 = vmatpush1.bf16.msra.mxu0 0
        %1132 = vmatprep.subr.bf16.mxu0 0
        %1133 = vmatpush1.bf16.msra.mxu0 0
        %1134 = vmatprep.subr.bf16.mxu0 0
        %1135 = vmatpush1.bf16.msra.mxu0 0
        %1136 = vmatprep.subr.bf16.mxu0 0
        %1137 = vmatpush1.bf16.msra.mxu0 0
        %1138 = vmatprep.subr.bf16.mxu0 0
        %1139 = vmatpush1.bf16.msra.mxu0 0
        %1140 = vmatprep.subr.bf16.mxu0 0
        %1141 = vmatpush1.bf16.msra.mxu0 0
        %1142 = vmatprep.mubr.bf16.mxu0 0
        %1143 = vmatmul.mubr.bf16.gmra.mrb[0].mxu0 %v996
        %v1144 = vpop.f32.mrb[0].mxu0
        %v1145 = vadd.f32 0.0, %v1144
        %v1146 = vpop.f32.mrb[0].mxu0
        %v1147 = vadd.f32 0.0, %v1146
        %v1148 = vpop.f32.mrb[0].mxu0
        %v1149 = vpop.f32.mrb[0].mxu0
        %1150 = vdwg.mxu0
        %1151 = vmatprep.subr.bf16.mxu0 %v1020
        %1152 = vmatpush1.bf16.msra.mxu0 %v1017
        %1153 = vmatprep.subr.bf16.mxu0 0
        %1154 = vmatpush1.bf16.msra.mxu0 0
        %1155 = vmatprep.subr.bf16.mxu0 0
        %1156 = vmatpush1.bf16.msra.mxu0 0
        %1157 = vmatprep.subr.bf16.mxu0 0
        %1158 = vmatpush1.bf16.msra.mxu0 0
        %1159 = vmatprep.subr.bf16.mxu0 0
        %1160 = vmatpush1.bf16.msra.mxu0 0
        %1161 = vmatprep.subr.bf16.mxu0 0
        %1162 = vmatpush1.bf16.msra.mxu0 0
        %1163 = vmatprep.subr.bf16.mxu0 0
        %1164 = vmatpush1.bf16.msra.mxu0 0
        %1165 = vmatprep.subr.bf16.mxu0 0
        %1166 = vmatpush1.bf16.msra.mxu0 0
        %1167 = vmatprep.subr.bf16.mxu0 0
        %1168 = vmatpush1.bf16.msra.mxu0 0
        %1169 = vmatprep.subr.bf16.mxu0 0
        %1170 = vmatpush1.bf16.msra.mxu0 0
        %1171 = vmatprep.subr.bf16.mxu0 0
        %1172 = vmatpush1.bf16.msra.mxu0 0
        %1173 = vmatprep.subr.bf16.mxu0 0
        %1174 = vmatpush1.bf16.msra.mxu0 0
        %1175 = vmatprep.subr.bf16.mxu0 0
        %1176 = vmatpush1.bf16.msra.mxu0 0
        %1177 = vmatprep.subr.bf16.mxu0 0
        %1178 = vmatpush1.bf16.msra.mxu0 0
        %1179 = vmatprep.subr.bf16.mxu0 0
        %1180 = vmatpush1.bf16.msra.mxu0 0
        %1181 = vmatprep.subr.bf16.mxu0 0
        %1182 = vmatpush1.bf16.msra.mxu0 0
        %1183 = vmatprep.mubr.bf16.mxu0 0
        %1184 = vmatmul.mubr.bf16.gmra.mrb[0].mxu0 %v996
        %v1185 = vpop.f32.mrb[0].mxu0
        %v1186 = vadd.f32 0.0, %v1185
        %v1187 = vpop.f32.mrb[0].mxu0
        %v1188 = vadd.f32 0.0, %v1187
        %v1189 = vpop.f32.mrb[0].mxu0
        %v1190 = vpop.f32.mrb[0].mxu0
        %1191 = vdwg.mxu0
        %1192 = vmatprep.subr.bf16.mxu0 %v1026
        %1193 = vmatpush1.bf16.msra.mxu0 %v1023
        %1194 = vmatprep.subr.bf16.mxu0 0
        %1195 = vmatpush1.bf16.msra.mxu0 0
        %1196 = vmatprep.subr.bf16.mxu0 0
        %1197 = vmatpush1.bf16.msra.mxu0 0
        %1198 = vmatprep.subr.bf16.mxu0 0
        %1199 = vmatpush1.bf16.msra.mxu0 0
        %1200 = vmatprep.subr.bf16.mxu0 0
        %1201 = vmatpush1.bf16.msra.mxu0 0
        %1202 = vmatprep.subr.bf16.mxu0 0
        %1203 = vmatpush1.bf16.msra.mxu0 0
        %1204 = vmatprep.subr.bf16.mxu0 0
        %1205 = vmatpush1.bf16.msra.mxu0 0
        %1206 = vmatprep.subr.bf16.mxu0 0
        %1207 = vmatpush1.bf16.msra.mxu0 0
        %1208 = vmatprep.subr.bf16.mxu0 0
        %1209 = vmatpush1.bf16.msra.mxu0 0
        %1210 = vmatprep.subr.bf16.mxu0 0
        %1211 = vmatpush1.bf16.msra.mxu0 0
        %1212 = vmatprep.subr.bf16.mxu0 0
        %1213 = vmatpush1.bf16.msra.mxu0 0
        %1214 = vmatprep.subr.bf16.mxu0 0
        %1215 = vmatpush1.bf16.msra.mxu0 0
        %1216 = vmatprep.subr.bf16.mxu0 0
        %1217 = vmatpush1.bf16.msra.mxu0 0
        %1218 = vmatprep.subr.bf16.mxu0 0
        %1219 = vmatpush1.bf16.msra.mxu0 0
        %1220 = vmatprep.subr.bf16.mxu0 0
        %1221 = vmatpush1.bf16.msra.mxu0 0
        %1222 = vmatprep.subr.bf16.mxu0 0
        %1223 = vmatpush1.bf16.msra.mxu0 0
        %1224 = vmatprep.mubr.bf16.mxu0 0
        %1225 = vmatmul.mubr.bf16.gmra.mrb[0].mxu0 %v996
        %v1226 = vpop.f32.mrb[0].mxu0
        %v1227 = vadd.f32 0.0, %v1226
        %v1228 = vpop.f32.mrb[0].mxu0
        %v1229 = vadd.f32 0.0, %v1228
        %v1230 = vpop.f32.mrb[0].mxu0
        %v1231 = vpop.f32.mrb[0].mxu0
        %1232 = vdwg.mxu0
        %v1233 = vadd.f32 %v793, %v1063
        %v1234 = vadd.f32 %v795, %v1065
        %v1235 = vadd.f32 %v834, %v1104
        %v1236 = vadd.f32 %v836, %v1106
        %v1237 = vadd.f32 %v875, %v1145
        %v1238 = vadd.f32 %v877, %v1147
        %v1239 = vadd.f32 %v916, %v1186
        %v1240 = vadd.f32 %v918, %v1188
        %v1241 = vadd.f32 %v957, %v1227
        %v1242 = vadd.f32 %v959, %v1229
        %v1243 = vld [vmem:[%s2] sm:$0xff]
        %1245 = vset.pattern.permute.xlu0 0
        %1246 = vperm.xlu0 %1245, %v1243
        %v1247 = vpop.permute.xlu0 %1246
        %v1249 = vadd.f32 %v1233, %v1247
        %v1250 = vadd.f32 %v1234, %v1247
        %v1251 = vadd.f32 %v1235, %v1247
        %v1252 = vadd.f32 %v1236, %v1247
        %v1253 = vadd.f32 %v1237, %v1247
        %v1254 = vadd.f32 %v1238, %v1247
        %v1255 = vadd.f32 %v1239, %v1247
        %v1256 = vadd.f32 %v1240, %v1247
        %v1257 = vadd.f32 %v1241, %v1247
        %v1258 = vadd.f32 %v1242, %v1247
        %v1259 = vmul.f32 %v1249, 0.2
        %v1260 = vmul.f32 %v1250, 0.2
        %v1261 = vmul.f32 %v1251, 0.2
        %v1262 = vmul.f32 %v1252, 0.2
        %v1263 = vmul.f32 %v1253, 0.2
        %v1264 = vmul.f32 %v1254, 0.2
        %v1265 = vmul.f32 %v1255, 0.2
        %v1266 = vmul.f32 %v1256, 0.2
        %v1267 = vmul.f32 %v1257, 0.2
        %v1268 = vmul.f32 %v1258, 0.2
        %v1269 = vmax.f32 %v1249, %v1259
        %v1270 = vmax.f32 %v1250, %v1260
        %v1271 = vmax.f32 %v1251, %v1261
        %v1272 = vmax.f32 %v1252, %v1262
        %v1273 = vmax.f32 %v1253, %v1263
        %v1274 = vmax.f32 %v1254, %v1264
        %v1275 = vmax.f32 %v1255, %v1265
        %v1276 = vmax.f32 %v1256, %v1266
        %v1277 = vmax.f32 %v1257, %v1267
        %v1278 = vmax.f32 %v1258, %v1268
        %v1279 = vmul.f32 %v1269, %v1269
        %v1280 = vmul.f32 %v1270, %v1270
        %v1281 = vmul.f32 %v1271, %v1271
        %v1282 = vmul.f32 %v1272, %v1272
        %v1283 = vmul.f32 %v1273, %v1273
        %v1284 = vmul.f32 %v1274, %v1274
        %v1285 = vmul.f32 %v1275, %v1275
        %v1286 = vmul.f32 %v1276, %v1276
        %v1287 = vmul.f32 %v1277, %v1277
        %v1288 = vmul.f32 %v1278, %v1278
        %v1289 = vrot.slane %v1279, 4
        %v1290 = vadd.f32 %v1279, %v1289
        %v1291 = vrot.slane %v1290, 2
        %v1292 = vadd.f32 %v1290, %v1291
        %v1293 = vrot.slane %v1292, 1
        %v1294 = vadd.f32 %v1292, %v1293
        %v1295 = vrot.slane %v1280, 4
        %v1296 = vadd.f32 %v1280, %v1295
        %v1297 = vrot.slane %v1296, 2
        %v1298 = vadd.f32 %v1296, %v1297
        %v1299 = vrot.slane %v1298, 1
        %v1300 = vadd.f32 %v1298, %v1299
        %v1301 = vrot.slane %v1281, 4
        %v1302 = vadd.f32 %v1281, %v1301
        %v1303 = vrot.slane %v1302, 2
        %v1304 = vadd.f32 %v1302, %v1303
        %v1305 = vrot.slane %v1304, 1
        %v1306 = vadd.f32 %v1304, %v1305
        %v1307 = vrot.slane %v1282, 4
        %v1308 = vadd.f32 %v1282, %v1307
        %v1309 = vrot.slane %v1308, 2
        %v1310 = vadd.f32 %v1308, %v1309
        %v1311 = vrot.slane %v1310, 1
        %v1312 = vadd.f32 %v1310, %v1311
        %v1313 = vrot.slane %v1283, 4
        %v1314 = vadd.f32 %v1283, %v1313
        %v1315 = vrot.slane %v1314, 2
        %v1316 = vadd.f32 %v1314, %v1315
        %v1317 = vrot.slane %v1316, 1
        %v1318 = vadd.f32 %v1316, %v1317
        %v1319 = vrot.slane %v1284, 4
        %v1320 = vadd.f32 %v1284, %v1319
        %v1321 = vrot.slane %v1320, 2
        %v1322 = vadd.f32 %v1320, %v1321
        %v1323 = vrot.slane %v1322, 1
        %v1324 = vadd.f32 %v1322, %v1323
        %v1325 = vrot.slane %v1285, 4
        %v1326 = vadd.f32 %v1285, %v1325
        %v1327 = vrot.slane %v1326, 2
        %v1328 = vadd.f32 %v1326, %v1327
        %v1329 = vrot.slane %v1328, 1
        %v1330 = vadd.f32 %v1328, %v1329
        %v1331 = vrot.slane %v1286, 4
        %v1332 = vadd.f32 %v1286, %v1331
        %v1333 = vrot.slane %v1332, 2
        %v1334 = vadd.f32 %v1332, %v1333
        %v1335 = vrot.slane %v1334, 1
        %v1336 = vadd.f32 %v1334, %v1335
        %v1337 = vrot.slane %v1287, 4
        %v1338 = vadd.f32 %v1287, %v1337
        %v1339 = vrot.slane %v1338, 2
        %v1340 = vadd.f32 %v1338, %v1339
        %v1341 = vrot.slane %v1340, 1
        %v1342 = vadd.f32 %v1340, %v1341
        %vm1343 = vcmask 31744
        %v1344 = vsel %vm1343, %v1288, 0.0
        %v1345 = vrot.slane %v1344, 4
        %v1346 = vadd.f32 %v1344, %v1345
        %v1347 = vrot.slane %v1346, 2
        %v1348 = vadd.f32 %v1346, %v1347
        %v1349 = vrot.slane %v1348, 1
        %v1350 = vadd.f32 %v1348, %v1349
        %v1351 = vrcp.pop 8.0
        %v1352 = vmul.f32 %v1294, %v1351
        %v1353 = vmul.f32 %v1300, %v1351
        %v1354 = vmul.f32 %v1306, %v1351
        %v1355 = vmul.f32 %v1312, %v1351
        %v1356 = vmul.f32 %v1318, %v1351
        %v1357 = vmul.f32 %v1324, %v1351
        %v1358 = vmul.f32 %v1330, %v1351
        %v1359 = vmul.f32 %v1336, %v1351
        %v1360 = vmul.f32 %v1342, %v1351
        %v1361 = vmul.f32 %v1350, %v1351
        %v1362 = vadd.f32 %v1352, 1e-08
        %v1363 = vadd.f32 %v1353, 1e-08
        %v1364 = vadd.f32 %v1354, 1e-08
        %v1365 = vadd.f32 %v1355, 1e-08
        %v1366 = vadd.f32 %v1356, 1e-08
        %v1367 = vadd.f32 %v1357, 1e-08
        %v1368 = vadd.f32 %v1358, 1e-08
        %v1369 = vadd.f32 %v1359, 1e-08
        %v1370 = vadd.f32 %v1360, 1e-08
        %v1371 = vadd.f32 %v1361, 1e-08
        %v1372 = vrsqrt.pop %v1362
        %v1373 = vrsqrt.pop %v1363
        %v1374 = vrsqrt.pop %v1364
        %v1375 = vrsqrt.pop %v1365
        %v1376 = vrsqrt.pop %v1366
        %v1377 = vrsqrt.pop %v1367
        %v1378 = vrsqrt.pop %v1368
        %v1379 = vrsqrt.pop %v1369
        %v1380 = vrsqrt.pop %v1370
        %v1381 = vrsqrt.pop %v1371
        %v1382 = vmul.f32 %v1269, %v1372
        %v1383 = vmul.f32 %v1270, %v1373
        %v1384 = vmul.f32 %v1271, %v1374
        %v1385 = vmul.f32 %v1272, %v1375
        %v1386 = vmul.f32 %v1273, %v1376
        %v1387 = vmul.f32 %v1274, %v1377
        %v1388 = vmul.f32 %v1275, %v1378
        %v1389 = vmul.f32 %v1276, %v1379
        %v1390 = vmul.f32 %v1277, %v1380
        %v1391 = vmul.f32 %v1278, %v1381
        %v1392 = vlaneseq
        %v1393 = vand.u32 %v1392, 127
        %v1394 = vadd.s32 %v1393, 128
        %v1395 = vadd.s32 %v1393, 256
        %v1396 = vadd.s32 %v1393, 384
        %v1397 = vadd.s32 %v1393, 512
        %v1398 = vadd.s32 %v1393, 640
        %v1399 = vadd.s32 %v1393, 768
        %v1400 = vadd.s32 %v1393, 896
        %v1401 = vadd.s32 %v1393, 1024
        %v1402 = vadd.s32 %v1393, 1152
        %1403 = vrot.lane.b32.xlu0 %v1393, 34
        %v1404 = vpop.permute.xlu0 %1403
        %vm1405 = vcmask 277504
        %v1406 = vsel %vm1405, %v1393, %v1404
        %1407 = vrot.lane.b32.xlu0 %v1406, 68
        %v1408 = vpop.permute.xlu0 %1407
        %vm1409 = vcmask 556032
        %v1410 = vsel %vm1409, %v1406, %v1408
        %1411 = vrot.lane.b32.xlu0 %v1410, 8
        %v1412 = vpop.permute.xlu0 %1411
        %1413 = vrot.lane.b32.xlu0 %v1408, 8
        %v1414 = vpop.permute.xlu0 %1413
        %vm1415 = vcmask 64512
        %v1416 = vsel %vm1415, %v1412, %v1414
        %v1417 = vsel %vm1415, %v1408, %v1412
        %1418 = vrot.lane.b32.xlu0 %v1410, 16
        %v1419 = vpop.permute.xlu0 %1418
        %1420 = vrot.lane.b32.xlu0 %v1417, 16
        %v1421 = vpop.permute.xlu0 %1420
        %1422 = vrot.lane.b32.xlu0 %v1416, 16
        %v1423 = vpop.permute.xlu0 %1422
        %vm1424 = vcmask 130048
        %v1425 = vsel %vm1424, %v1419, %v1421
        %v1426 = vsel %vm1424, %v1421, %v1423
        %v1427 = vsel %vm1424, %v1416, %v1419
        %1428 = vrot.lane.b32.xlu0 %v1410, 32
        %v1429 = vpop.permute.xlu0 %1428
        %1430 = vrot.lane.b32.xlu0 %v1417, 32
        %v1431 = vpop.permute.xlu0 %1430
        %1432 = vrot.lane.b32.xlu0 %v1427, 32
        %v1433 = vpop.permute.xlu0 %1432
        %1434 = vrot.lane.b32.xlu0 %v1425, 32
        %v1435 = vpop.permute.xlu0 %1434
        %1436 = vrot.lane.b32.xlu0 %v1426, 32
        %v1437 = vpop.permute.xlu0 %1436
        %vm1438 = vcmask 261120
        %v1439 = vsel %vm1438, %v1429, %v1431
        %v1440 = vsel %vm1438, %v1431, %v1433
        %v1441 = vsel %vm1438, %v1433, %v1435
        %v1442 = vsel %vm1438, %v1435, %v1437
        %v1443 = vsel %vm1438, %v1426, %v1429
        %1444 = vrot.lane.b32.xlu0 %v1410, 64
        %v1445 = vpop.permute.xlu0 %1444
        %1446 = vrot.lane.b32.xlu0 %v1417, 64
        %v1447 = vpop.permute.xlu0 %1446
        %vm1448 = vcmask 523264
        %v1449 = vsel %vm1448, %v1445, %v1447
        %v1450 = vsel %vm1448, %v1442, %v1445
        %vm1451 = vcmp.lt.s32.totalorder %v1410, 32
        %vm1452 = vcmp.lt.s32.totalorder %v1417, 32
        %vm1453 = vcmp.lt.s32.totalorder %v1427, 32
        %vm1454 = vcmp.lt.s32.totalorder %v1425, 32
        %vm1455 = vcmp.lt.s32.totalorder %v1443, 32
        %vm1456 = vcmp.lt.s32.totalorder %v1439, 32
        %vm1457 = vcmp.lt.s32.totalorder %v1440, 32
        %vm1458 = vcmp.lt.s32.totalorder %v1441, 32
        %vm1459 = vcmp.lt.s32.totalorder %v1450, 32
        %vm1460 = vcmp.lt.s32.totalorder %v1449, 32
        %p1461 = scmp.eq.s32.totalorder %s27, 0
        %s1462 = scalar_select %p1461, 34, 0
        %s1463 = scalar_select %p1461, 1122, 1156
        %v1464 = vstv %s1462
        %vm1465 = vcmp.ge.s32.totalorder %v1393, %v1464
        %vm1466 = vcmp.ge.s32.totalorder %v1394, %v1464
        %vm1467 = vcmp.ge.s32.totalorder %v1395, %v1464
        %vm1468 = vcmp.ge.s32.totalorder %v1396, %v1464
        %vm1469 = vcmp.ge.s32.totalorder %v1397, %v1464
        %vm1470 = vcmp.ge.s32.totalorder %v1398, %v1464
        %vm1471 = vcmp.ge.s32.totalorder %v1399, %v1464
        %vm1472 = vcmp.ge.s32.totalorder %v1400, %v1464
        %vm1473 = vcmp.ge.s32.totalorder %v1401, %v1464
        %vm1474 = vcmp.ge.s32.totalorder %v1402, %v1464
        %vm1475 = vmand %vm1451, %vm1465
        %vm1476 = vmand %vm1452, %vm1466
        %vm1477 = vmand %vm1453, %vm1467
        %vm1478 = vmand %vm1454, %vm1468
        %vm1479 = vmand %vm1455, %vm1469
        %vm1480 = vmand %vm1456, %vm1470
        %vm1481 = vmand %vm1457, %vm1471
        %vm1482 = vmand %vm1458, %vm1472
        %vm1483 = vmand %vm1459, %vm1473
        %vm1484 = vmand %vm1460, %vm1474
        %v1485 = vstv %s1463
        %vm1486 = vcmp.lt.s32.totalorder %v1393, %v1485
        %vm1487 = vcmp.lt.s32.totalorder %v1394, %v1485
        %vm1488 = vcmp.lt.s32.totalorder %v1395, %v1485
        %vm1489 = vcmp.lt.s32.totalorder %v1396, %v1485
        %vm1490 = vcmp.lt.s32.totalorder %v1397, %v1485
        %vm1491 = vcmp.lt.s32.totalorder %v1398, %v1485
        %vm1492 = vcmp.lt.s32.totalorder %v1399, %v1485
        %vm1493 = vcmp.lt.s32.totalorder %v1400, %v1485
        %vm1494 = vcmp.lt.s32.totalorder %v1401, %v1485
        %vm1495 = vcmp.lt.s32.totalorder %v1402, %v1485
        %vm1496 = vmand %vm1475, %vm1486
        %vm1497 = vmand %vm1476, %vm1487
        %vm1498 = vmand %vm1477, %vm1488
        %vm1499 = vmand %vm1478, %vm1489
        %vm1500 = vmand %vm1479, %vm1490
        %vm1501 = vmand %vm1480, %vm1491
        %vm1502 = vmand %vm1481, %vm1492
        %vm1503 = vmand %vm1482, %vm1493
        %vm1504 = vmand %vm1483, %vm1494
        %vm1505 = vmand %vm1484, %vm1495
        %v1506 = vsel %vm1496, 1, 0
        %v1507 = vsel %vm1497, 1, 0
        %v1508 = vsel %vm1498, 1, 0
        %v1509 = vsel %vm1499, 1, 0
        %v1510 = vsel %vm1500, 1, 0
        %v1511 = vsel %vm1501, 1, 0
        %v1512 = vsel %vm1502, 1, 0
        %v1513 = vsel %vm1503, 1, 0
        %v1514 = vsel %vm1504, 1, 0
        %v1515 = vsel %vm1505, 1, 0
        %v1516 = vlaneseq
        %v1517 = vshrl.u32 %v1516, 7
        %v1518 = vsub.s32 0, %v1517
        %v1519 = vrot.slane %v1506, %v1518
        %v1520 = vlaneseq
        %v1521 = vshrl.u32 %v1520, 7
        %v1522 = vsub.s32 0, %v1521
        %v1523 = vrot.slane %v1507, %v1522
        %v1524 = vlaneseq
        %v1525 = vshrl.u32 %v1524, 7
        %v1526 = vsub.s32 0, %v1525
        %v1527 = vrot.slane %v1508, %v1526
        %v1528 = vlaneseq
        %v1529 = vshrl.u32 %v1528, 7
        %v1530 = vsub.s32 0, %v1529
        %v1531 = vrot.slane %v1509, %v1530
        %v1532 = vlaneseq
        %v1533 = vshrl.u32 %v1532, 7
        %v1534 = vsub.s32 0, %v1533
        %v1535 = vrot.slane %v1510, %v1534
        %v1536 = vlaneseq
        %v1537 = vshrl.u32 %v1536, 7
        %v1538 = vsub.s32 0, %v1537
        %v1539 = vrot.slane %v1511, %v1538
        %v1540 = vlaneseq
        %v1541 = vshrl.u32 %v1540, 7
        %v1542 = vsub.s32 0, %v1541
        %v1543 = vrot.slane %v1512, %v1542
        %v1544 = vlaneseq
        %v1545 = vshrl.u32 %v1544, 7
        %v1546 = vsub.s32 0, %v1545
        %v1547 = vrot.slane %v1513, %v1546
        %v1548 = vlaneseq
        %v1549 = vshrl.u32 %v1548, 7
        %v1550 = vsub.s32 0, %v1549
        %v1551 = vrot.slane %v1514, %v1550
        %v1552 = vlaneseq
        %v1553 = vshrl.u32 %v1552, 7
        %v1554 = vsub.s32 0, %v1553
        %v1555 = vrot.slane %v1515, %v1554
        %vm1556 = vcmp.eq.s32.totalorder %v1519, 1
        %vm1557 = vcmp.eq.s32.totalorder %v1523, 1
        %vm1558 = vcmp.eq.s32.totalorder %v1527, 1
        %vm1559 = vcmp.eq.s32.totalorder %v1531, 1
        %vm1560 = vcmp.eq.s32.totalorder %v1535, 1
        %vm1561 = vcmp.eq.s32.totalorder %v1539, 1
        %vm1562 = vcmp.eq.s32.totalorder %v1543, 1
        %vm1563 = vcmp.eq.s32.totalorder %v1547, 1
        %vm1564 = vcmp.eq.s32.totalorder %v1551, 1
        %vm1565 = vcmp.eq.s32.totalorder %v1555, 1
        %v1566 = vsel %vm1556, %v1382, 0.0
        %v1567 = vsel %vm1557, %v1383, 0.0
        %v1568 = vsel %vm1558, %v1384, 0.0
        %v1569 = vsel %vm1559, %v1385, 0.0
        %v1570 = vsel %vm1560, %v1386, 0.0
        %v1571 = vsel %vm1561, %v1387, 0.0
        %v1572 = vsel %vm1562, %v1388, 0.0
        %v1573 = vsel %vm1563, %v1389, 0.0
        %v1574 = vsel %vm1564, %v1390, 0.0
        %v1575 = vsel %vm1565, %v1391, 0.0
        %v1576 = vpack.c.bf16 %v1566, %v1566
        %v1577 = vpack.c.bf16 %v1567, %v1567
        %v1578 = vpack.c.bf16 %v1568, %v1568
        %v1579 = vpack.c.bf16 %v1569, %v1569
        %v1580 = vpack.c.bf16 %v1570, %v1570
        %v1581 = vpack.c.bf16 %v1571, %v1571
        %v1582 = vpack.c.bf16 %v1572, %v1572
        %v1583 = vpack.c.bf16 %v1573, %v1573
        %v1584 = vpack.c.bf16 %v1574, %v1574
        %v1585 = vpack.c.bf16 %v1575, %v1575
        %1596 = vrot.lane.b32.xlu0 %v1576, 1
        %v1597 = vpop.permute.xlu0 %1596
        %1598 = vrot.lane.b32.xlu0 %v1577, 1
        %v1599 = vpop.permute.xlu0 %1598
        %1600 = vrot.lane.b32.xlu0 %v1578, 1
        %v1601 = vpop.permute.xlu0 %1600
        %1602 = vrot.lane.b32.xlu0 %v1579, 1
        %v1603 = vpop.permute.xlu0 %1602
        %1604 = vrot.lane.b32.xlu0 %v1580, 1
        %v1605 = vpop.permute.xlu0 %1604
        %1606 = vrot.lane.b32.xlu0 %v1581, 1
        %v1607 = vpop.permute.xlu0 %1606
        %1608 = vrot.lane.b32.xlu0 %v1582, 1
        %v1609 = vpop.permute.xlu0 %1608
        %1610 = vrot.lane.b32.xlu0 %v1583, 1
        %v1611 = vpop.permute.xlu0 %1610
        %1612 = vrot.lane.b32.xlu0 %v1584, 1
        %v1613 = vpop.permute.xlu0 %1612
        %1614 = vrot.lane.b32.xlu0 %v1585, 1
        %v1615 = vpop.permute.xlu0 %1614
        %vm1616 = vcmask 7168
        %v1617 = vsel %vm1616, %v1597, %v1599
        %v1618 = vsel %vm1616, %v1599, %v1601
        %v1619 = vsel %vm1616, %v1601, %v1603
        %v1620 = vsel %vm1616, %v1603, %v1605
        %v1621 = vsel %vm1616, %v1605, %v1607
        %v1622 = vsel %vm1616, %v1607, %v1609
        %v1623 = vsel %vm1616, %v1609, %v1611
        %v1624 = vsel %vm1616, %v1611, %v1613
        %v1625 = vsel %vm1616, %v1613, %v1615
        %vm1626 = vcmask 7168
        %v1629 = vsel %vm1626, 0, %v1597
        %vm1630 = vcmask 39936
        %v1632 = vsel %vm1630, %v1625, 0
        %v1634 = vrot.slane %v1629, 4
        %v1635 = vrot.slane %v1617, 4
        %v1636 = vrot.slane %v1618, 4
        %v1637 = vrot.slane %v1619, 4
        %v1638 = vrot.slane %v1620, 4
        %v1639 = vrot.slane %v1621, 4
        %v1640 = vrot.slane %v1622, 4
        %v1641 = vrot.slane %v1623, 4
        %v1642 = vrot.slane %v1624, 4
        %1643 = vrot.lane.b32.xlu0 %v1634, 94
        %v1644 = vpop.permute.xlu0 %1643
        %1645 = vrot.lane.b32.xlu0 %v1635, 94
        %v1646 = vpop.permute.xlu0 %1645
        %1647 = vrot.lane.b32.xlu0 %v1636, 94
        %v1648 = vpop.permute.xlu0 %1647
        %1649 = vrot.lane.b32.xlu0 %v1637, 94
        %v1650 = vpop.permute.xlu0 %1649
        %1651 = vrot.lane.b32.xlu0 %v1638, 94
        %v1652 = vpop.permute.xlu0 %1651
        %1653 = vrot.lane.b32.xlu0 %v1639, 94
        %v1654 = vpop.permute.xlu0 %1653
        %1655 = vrot.lane.b32.xlu0 %v1640, 94
        %v1656 = vpop.permute.xlu0 %1655
        %1657 = vrot.lane.b32.xlu0 %v1641, 94
        %v1658 = vpop.permute.xlu0 %1657
        %1659 = vrot.lane.b32.xlu0 %v1642, 94
        %v1660 = vpop.permute.xlu0 %1659
        %v1661 = vsel %vm355, %v1644, %v1646
        %v1662 = vsel %vm355, %v1646, %v1648
        %v1663 = vsel %vm355, %v1648, %v1650
        %v1664 = vsel %vm355, %v1650, %v1652
        %v1665 = vsel %vm355, %v1652, %v1654
        %v1666 = vsel %vm355, %v1654, %v1656
        %v1667 = vsel %vm355, %v1656, %v1658
        %v1668 = vsel %vm355, %v1658, %v1660
        %1670 = vrot.lane.b32.xlu0 %v1629, 60
        %v1671 = vpop.permute.xlu0 %1670
        %1672 = vrot.lane.b32.xlu0 %v1617, 60
        %v1673 = vpop.permute.xlu0 %1672
        %1674 = vrot.lane.b32.xlu0 %v1618, 60
        %v1675 = vpop.permute.xlu0 %1674
        %1676 = vrot.lane.b32.xlu0 %v1619, 60
        %v1677 = vpop.permute.xlu0 %1676
        %1678 = vrot.lane.b32.xlu0 %v1620, 60
        %v1679 = vpop.permute.xlu0 %1678
        %1680 = vrot.lane.b32.xlu0 %v1621, 60
        %v1681 = vpop.permute.xlu0 %1680
        %1682 = vrot.lane.b32.xlu0 %v1622, 60
        %v1683 = vpop.permute.xlu0 %1682
        %1684 = vrot.lane.b32.xlu0 %v1623, 60
        %v1685 = vpop.permute.xlu0 %1684
        %1686 = vrot.lane.b32.xlu0 %v1624, 60
        %v1687 = vpop.permute.xlu0 %1686
        %1688 = vrot.lane.b32.xlu0 %v1632, 60
        %v1689 = vpop.permute.xlu0 %1688
        %v1690 = vsel %vm390, %v1671, %v1673
        %v1691 = vsel %vm390, %v1673, %v1675
        %v1692 = vsel %vm390, %v1675, %v1677
        %v1693 = vsel %vm390, %v1677, %v1679
        %v1694 = vsel %vm390, %v1679, %v1681
        %v1695 = vsel %vm390, %v1681, %v1683
        %v1696 = vsel %vm390, %v1683, %v1685
        %v1697 = vsel %vm390, %v1685, %v1687
        %v1698 = vsel %vm390, %v1687, %v1689
        %v1700 = vsel %vm431, %v1629, %v1661
        %v1704 = vsel %vm431, %v1617, %v1662
        %v1708 = vsel %vm431, %v1618, %v1663
        %v1712 = vsel %vm431, %v1619, %v1664
        %v1716 = vsel %vm431, %v1620, %v1665
        %v1720 = vsel %vm431, %v1621, %v1666
        %v1724 = vsel %vm431, %v1622, %v1667
        %v1728 = vsel %vm431, %v1623, %v1668
        %v1732 = vsel %vm431, %v1624, %v1660
        %v1734 = vld [vmem:[%s3] sm:$0xf]
        %s1735 = scalar_lea.vmem %s3, 4
        %v1736 = vld [vmem:[%s1735] sm:$0xf]
        %1746 = vrot.lane.b32.xlu0 %v1700, 127
        %v1747 = vpop.permute.xlu0 %1746
        %1748 = vrot.lane.b32.xlu0 %v1704, 127
        %v1749 = vpop.permute.xlu0 %1748
        %1750 = vrot.lane.b32.xlu0 %v1708, 127
        %v1751 = vpop.permute.xlu0 %1750
        %1752 = vrot.lane.b32.xlu0 %v1712, 127
        %v1753 = vpop.permute.xlu0 %1752
        %1754 = vrot.lane.b32.xlu0 %v1716, 127
        %v1755 = vpop.permute.xlu0 %1754
        %1756 = vrot.lane.b32.xlu0 %v1720, 127
        %v1757 = vpop.permute.xlu0 %1756
        %1758 = vrot.lane.b32.xlu0 %v1724, 127
        %v1759 = vpop.permute.xlu0 %1758
        %1760 = vrot.lane.b32.xlu0 %v1728, 127
        %v1761 = vpop.permute.xlu0 %1760
        %1762 = vrot.lane.b32.xlu0 %v1732, 127
        %v1763 = vpop.permute.xlu0 %1762
        %1764 = vrot.lane.b32.xlu0 %v1690, 127
        %v1765 = vpop.permute.xlu0 %1764
        %1766 = vrot.lane.b32.xlu0 %v1691, 127
        %v1767 = vpop.permute.xlu0 %1766
        %1768 = vrot.lane.b32.xlu0 %v1692, 127
        %v1769 = vpop.permute.xlu0 %1768
        %1770 = vrot.lane.b32.xlu0 %v1693, 127
        %v1771 = vpop.permute.xlu0 %1770
        %1772 = vrot.lane.b32.xlu0 %v1694, 127
        %v1773 = vpop.permute.xlu0 %1772
        %1774 = vrot.lane.b32.xlu0 %v1695, 127
        %v1775 = vpop.permute.xlu0 %1774
        %1776 = vrot.lane.b32.xlu0 %v1696, 127
        %v1777 = vpop.permute.xlu0 %1776
        %1778 = vrot.lane.b32.xlu0 %v1697, 127
        %v1779 = vpop.permute.xlu0 %1778
        %1780 = vrot.lane.b32.xlu0 %v1698, 127
        %v1781 = vpop.permute.xlu0 %1780
        %v1782 = vsel %vm485, %v1747, %v1749
        %v1783 = vsel %vm485, %v1749, %v1751
        %v1784 = vsel %vm485, %v1751, %v1753
        %v1785 = vsel %vm485, %v1753, %v1755
        %v1786 = vsel %vm485, %v1755, %v1757
        %v1787 = vsel %vm485, %v1757, %v1759
        %v1788 = vsel %vm485, %v1759, %v1761
        %v1789 = vsel %vm485, %v1761, %v1763
        %v1790 = vsel %vm485, %v1765, %v1767
        %v1791 = vsel %vm485, %v1767, %v1769
        %v1792 = vsel %vm485, %v1769, %v1771
        %v1793 = vsel %vm485, %v1771, %v1773
        %v1794 = vsel %vm485, %v1773, %v1775
        %v1795 = vsel %vm485, %v1775, %v1777
        %v1796 = vsel %vm485, %v1777, %v1779
        %v1797 = vsel %vm485, %v1779, %v1781
        %vm1807 = vcmask 195584
        %v1809 = vsel %vm1807, %v1736, 0
        %v1812 = vsel %vm431, %v1790, 0
        %v1815 = vsel %vm431, %v1791, 0
        %v1818 = vsel %vm431, %v1792, 0
        %v1821 = vsel %vm431, %v1793, 0
        %v1824 = vsel %vm431, %v1794, 0
        %v1827 = vsel %vm431, %v1795, 0
        %v1830 = vsel %vm431, %v1796, 0
        %v1833 = vsel %vm431, %v1797, 0
        %v1836 = vsel %vm431, %v1781, 0
        %1838 = vmatprep.subr.bf16.mxu0 %v1783
        %1839 = vmatpush1.bf16.msra.mxu0 %v1782
        %1840 = vmatprep.subr.bf16.mxu0 %v1815
        %1841 = vmatpush1.bf16.msra.mxu0 %v1812
        %1842 = vmatprep.subr.bf16.mxu0 0
        %1843 = vmatpush1.bf16.msra.mxu0 0
        %1844 = vmatprep.subr.bf16.mxu0 0
        %1845 = vmatpush1.bf16.msra.mxu0 0
        %1846 = vmatprep.subr.bf16.mxu0 0
        %1847 = vmatpush1.bf16.msra.mxu0 0
        %1848 = vmatprep.subr.bf16.mxu0 0
        %1849 = vmatpush1.bf16.msra.mxu0 0
        %1850 = vmatprep.subr.bf16.mxu0 0
        %1851 = vmatpush1.bf16.msra.mxu0 0
        %1852 = vmatprep.subr.bf16.mxu0 0
        %1853 = vmatpush1.bf16.msra.mxu0 0
        %1854 = vmatprep.subr.bf16.mxu0 0
        %1855 = vmatpush1.bf16.msra.mxu0 0
        %1856 = vmatprep.subr.bf16.mxu0 0
        %1857 = vmatpush1.bf16.msra.mxu0 0
        %1858 = vmatprep.subr.bf16.mxu0 0
        %1859 = vmatpush1.bf16.msra.mxu0 0
        %1860 = vmatprep.subr.bf16.mxu0 0
        %1861 = vmatpush1.bf16.msra.mxu0 0
        %1862 = vmatprep.subr.bf16.mxu0 0
        %1863 = vmatpush1.bf16.msra.mxu0 0
        %1864 = vmatprep.subr.bf16.mxu0 0
        %1865 = vmatpush1.bf16.msra.mxu0 0
        %1866 = vmatprep.subr.bf16.mxu0 0
        %1867 = vmatpush1.bf16.msra.mxu0 0
        %1868 = vmatprep.subr.bf16.mxu0 0
        %1869 = vmatpush1.bf16.msra.mxu0 0
        %1870 = vmatprep.mubr.bf16.mxu0 0
        %1871 = vmatmul.mubr.bf16.gmra.mrb[0].mxu0 %v1809
        %v1872 = vpop.f32.mrb[0].mxu0
        %v1873 = vadd.f32 0.0, %v1872
        %v1874 = vpop.f32.mrb[0].mxu0
        %v1875 = vadd.f32 0.0, %v1874
        %v1876 = vpop.f32.mrb[0].mxu0
        %v1877 = vpop.f32.mrb[0].mxu0
        %1878 = vdwg.mxu0
        %1879 = vmatprep.subr.bf16.mxu0 %v1785
        %1880 = vmatpush1.bf16.msra.mxu0 %v1784
        %1881 = vmatprep.subr.bf16.mxu0 %v1821
        %1882 = vmatpush1.bf16.msra.mxu0 %v1818
        %1883 = vmatprep.subr.bf16.mxu0 0
        %1884 = vmatpush1.bf16.msra.mxu0 0
        %1885 = vmatprep.subr.bf16.mxu0 0
        %1886 = vmatpush1.bf16.msra.mxu0 0
        %1887 = vmatprep.subr.bf16.mxu0 0
        %1888 = vmatpush1.bf16.msra.mxu0 0
        %1889 = vmatprep.subr.bf16.mxu0 0
        %1890 = vmatpush1.bf16.msra.mxu0 0
        %1891 = vmatprep.subr.bf16.mxu0 0
        %1892 = vmatpush1.bf16.msra.mxu0 0
        %1893 = vmatprep.subr.bf16.mxu0 0
        %1894 = vmatpush1.bf16.msra.mxu0 0
        %1895 = vmatprep.subr.bf16.mxu0 0
        %1896 = vmatpush1.bf16.msra.mxu0 0
        %1897 = vmatprep.subr.bf16.mxu0 0
        %1898 = vmatpush1.bf16.msra.mxu0 0
        %1899 = vmatprep.subr.bf16.mxu0 0
        %1900 = vmatpush1.bf16.msra.mxu0 0
        %1901 = vmatprep.subr.bf16.mxu0 0
        %1902 = vmatpush1.bf16.msra.mxu0 0
        %1903 = vmatprep.subr.bf16.mxu0 0
        %1904 = vmatpush1.bf16.msra.mxu0 0
        %1905 = vmatprep.subr.bf16.mxu0 0
        %1906 = vmatpush1.bf16.msra.mxu0 0
        %1907 = vmatprep.subr.bf16.mxu0 0
        %1908 = vmatpush1.bf16.msra.mxu0 0
        %1909 = vmatprep.subr.bf16.mxu0 0
        %1910 = vmatpush1.bf16.msra.mxu0 0
        %1911 = vmatprep.mubr.bf16.mxu0 0
        %1912 = vmatmul.mubr.bf16.gmra.mrb[0].mxu0 %v1809
        %v1913 = vpop.f32.mrb[0].mxu0
        %v1914 = vadd.f32 0.0, %v1913
        %v1915 = vpop.f32.mrb[0].mxu0
        %v1916 = vadd.f32 0.0, %v1915
        %v1917 = vpop.f32.mrb[0].mxu0
        %v1918 = vpop.f32.mrb[0].mxu0
        %1919 = vdwg.mxu0
        %1920 = vmatprep.subr.bf16.mxu0 %v1787
        %1921 = vmatpush1.bf16.msra.mxu0 %v1786
        %1922 = vmatprep.subr.bf16.mxu0 %v1827
        %1923 = vmatpush1.bf16.msra.mxu0 %v1824
        %1924 = vmatprep.subr.bf16.mxu0 0
        %1925 = vmatpush1.bf16.msra.mxu0 0
        %1926 = vmatprep.subr.bf16.mxu0 0
        %1927 = vmatpush1.bf16.msra.mxu0 0
        %1928 = vmatprep.subr.bf16.mxu0 0
        %1929 = vmatpush1.bf16.msra.mxu0 0
        %1930 = vmatprep.subr.bf16.mxu0 0
        %1931 = vmatpush1.bf16.msra.mxu0 0
        %1932 = vmatprep.subr.bf16.mxu0 0
        %1933 = vmatpush1.bf16.msra.mxu0 0
        %1934 = vmatprep.subr.bf16.mxu0 0
        %1935 = vmatpush1.bf16.msra.mxu0 0
        %1936 = vmatprep.subr.bf16.mxu0 0
        %1937 = vmatpush1.bf16.msra.mxu0 0
        %1938 = vmatprep.subr.bf16.mxu0 0
        %1939 = vmatpush1.bf16.msra.mxu0 0
        %1940 = vmatprep.subr.bf16.mxu0 0
        %1941 = vmatpush1.bf16.msra.mxu0 0
        %1942 = vmatprep.subr.bf16.mxu0 0
        %1943 = vmatpush1.bf16.msra.mxu0 0
        %1944 = vmatprep.subr.bf16.mxu0 0
        %1945 = vmatpush1.bf16.msra.mxu0 0
        %1946 = vmatprep.subr.bf16.mxu0 0
        %1947 = vmatpush1.bf16.msra.mxu0 0
        %1948 = vmatprep.subr.bf16.mxu0 0
        %1949 = vmatpush1.bf16.msra.mxu0 0
        %1950 = vmatprep.subr.bf16.mxu0 0
        %1951 = vmatpush1.bf16.msra.mxu0 0
        %1952 = vmatprep.mubr.bf16.mxu0 0
        %1953 = vmatmul.mubr.bf16.gmra.mrb[0].mxu0 %v1809
        %v1954 = vpop.f32.mrb[0].mxu0
        %v1955 = vadd.f32 0.0, %v1954
        %v1956 = vpop.f32.mrb[0].mxu0
        %v1957 = vadd.f32 0.0, %v1956
        %v1958 = vpop.f32.mrb[0].mxu0
        %v1959 = vpop.f32.mrb[0].mxu0
        %1960 = vdwg.mxu0
        %1961 = vmatprep.subr.bf16.mxu0 %v1789
        %1962 = vmatpush1.bf16.msra.mxu0 %v1788
        %1963 = vmatprep.subr.bf16.mxu0 %v1833
        %1964 = vmatpush1.bf16.msra.mxu0 %v1830
        %1965 = vmatprep.subr.bf16.mxu0 0
        %1966 = vmatpush1.bf16.msra.mxu0 0
        %1967 = vmatprep.subr.bf16.mxu0 0
        %1968 = vmatpush1.bf16.msra.mxu0 0
        %1969 = vmatprep.subr.bf16.mxu0 0
        %1970 = vmatpush1.bf16.msra.mxu0 0
        %1971 = vmatprep.subr.bf16.mxu0 0
        %1972 = vmatpush1.bf16.msra.mxu0 0
        %1973 = vmatprep.subr.bf16.mxu0 0
        %1974 = vmatpush1.bf16.msra.mxu0 0
        %1975 = vmatprep.subr.bf16.mxu0 0
        %1976 = vmatpush1.bf16.msra.mxu0 0
        %1977 = vmatprep.subr.bf16.mxu0 0
        %1978 = vmatpush1.bf16.msra.mxu0 0
        %1979 = vmatprep.subr.bf16.mxu0 0
        %1980 = vmatpush1.bf16.msra.mxu0 0
        %1981 = vmatprep.subr.bf16.mxu0 0
        %1982 = vmatpush1.bf16.msra.mxu0 0
        %1983 = vmatprep.subr.bf16.mxu0 0
        %1984 = vmatpush1.bf16.msra.mxu0 0
        %1985 = vmatprep.subr.bf16.mxu0 0
        %1986 = vmatpush1.bf16.msra.mxu0 0
        %1987 = vmatprep.subr.bf16.mxu0 0
        %1988 = vmatpush1.bf16.msra.mxu0 0
        %1989 = vmatprep.subr.bf16.mxu0 0
        %1990 = vmatpush1.bf16.msra.mxu0 0
        %1991 = vmatprep.subr.bf16.mxu0 0
        %1992 = vmatpush1.bf16.msra.mxu0 0
        %1993 = vmatprep.mubr.bf16.mxu0 0
        %1994 = vmatmul.mubr.bf16.gmra.mrb[0].mxu0 %v1809
        %v1995 = vpop.f32.mrb[0].mxu0
        %v1996 = vadd.f32 0.0, %v1995
        %v1997 = vpop.f32.mrb[0].mxu0
        %v1998 = vadd.f32 0.0, %v1997
        %v1999 = vpop.f32.mrb[0].mxu0
        %v2000 = vpop.f32.mrb[0].mxu0
        %2001 = vdwg.mxu0
        %2002 = vmatprep.subr.bf16.mxu0 0
        %2003 = vmatpush1.bf16.msra.mxu0 %v1763
        %2004 = vmatprep.subr.bf16.mxu0 0
        %2005 = vmatpush1.bf16.msra.mxu0 %v1836
        %2006 = vmatprep.subr.bf16.mxu0 0
        %2007 = vmatpush1.bf16.msra.mxu0 0
        %2008 = vmatprep.subr.bf16.mxu0 0
        %2009 = vmatpush1.bf16.msra.mxu0 0
        %2010 = vmatprep.subr.bf16.mxu0 0
        %2011 = vmatpush1.bf16.msra.mxu0 0
        %2012 = vmatprep.subr.bf16.mxu0 0
        %2013 = vmatpush1.bf16.msra.mxu0 0
        %2014 = vmatprep.subr.bf16.mxu0 0
        %2015 = vmatpush1.bf16.msra.mxu0 0
        %2016 = vmatprep.subr.bf16.mxu0 0
        %2017 = vmatpush1.bf16.msra.mxu0 0
        %2018 = vmatprep.subr.bf16.mxu0 0
        %2019 = vmatpush1.bf16.msra.mxu0 0
        %2020 = vmatprep.subr.bf16.mxu0 0
        %2021 = vmatpush1.bf16.msra.mxu0 0
        %2022 = vmatprep.subr.bf16.mxu0 0
        %2023 = vmatpush1.bf16.msra.mxu0 0
        %2024 = vmatprep.subr.bf16.mxu0 0
        %2025 = vmatpush1.bf16.msra.mxu0 0
        %2026 = vmatprep.subr.bf16.mxu0 0
        %2027 = vmatpush1.bf16.msra.mxu0 0
        %2028 = vmatprep.subr.bf16.mxu0 0
        %2029 = vmatpush1.bf16.msra.mxu0 0
        %2030 = vmatprep.subr.bf16.mxu0 0
        %2031 = vmatpush1.bf16.msra.mxu0 0
        %2032 = vmatprep.subr.bf16.mxu0 0
        %2033 = vmatpush1.bf16.msra.mxu0 0
        %2034 = vmatprep.mubr.bf16.mxu0 0
        %2035 = vmatmul.mubr.bf16.gmra.mrb[0].mxu0 %v1809
        %v2036 = vpop.f32.mrb[0].mxu0
        %v2037 = vadd.f32 0.0, %v2036
        %v2038 = vpop.f32.mrb[0].mxu0
        %v2039 = vpop.f32.mrb[0].mxu0
        %v2040 = vpop.f32.mrb[0].mxu0
        %2041 = vdwg.mxu0
        %v2043 = vsel %vm1807, %v1734, 0
        %v2046 = vsel %vm431, %v1690, 0
        %v2049 = vsel %vm431, %v1691, 0
        %v2052 = vsel %vm431, %v1692, 0
        %v2055 = vsel %vm431, %v1693, 0
        %v2058 = vsel %vm431, %v1694, 0
        %v2061 = vsel %vm431, %v1695, 0
        %v2064 = vsel %vm431, %v1696, 0
        %v2067 = vsel %vm431, %v1697, 0
        %v2070 = vsel %vm431, %v1698, 0
        %2072 = vmatprep.subr.bf16.mxu0 %v1704
        %2073 = vmatpush1.bf16.msra.mxu0 %v1700
        %2074 = vmatprep.subr.bf16.mxu0 %v2049
        %2075 = vmatpush1.bf16.msra.mxu0 %v2046
        %2076 = vmatprep.subr.bf16.mxu0 0
        %2077 = vmatpush1.bf16.msra.mxu0 0
        %2078 = vmatprep.subr.bf16.mxu0 0
        %2079 = vmatpush1.bf16.msra.mxu0 0
        %2080 = vmatprep.subr.bf16.mxu0 0
        %2081 = vmatpush1.bf16.msra.mxu0 0
        %2082 = vmatprep.subr.bf16.mxu0 0
        %2083 = vmatpush1.bf16.msra.mxu0 0
        %2084 = vmatprep.subr.bf16.mxu0 0
        %2085 = vmatpush1.bf16.msra.mxu0 0
        %2086 = vmatprep.subr.bf16.mxu0 0
        %2087 = vmatpush1.bf16.msra.mxu0 0
        %2088 = vmatprep.subr.bf16.mxu0 0
        %2089 = vmatpush1.bf16.msra.mxu0 0
        %2090 = vmatprep.subr.bf16.mxu0 0
        %2091 = vmatpush1.bf16.msra.mxu0 0
        %2092 = vmatprep.subr.bf16.mxu0 0
        %2093 = vmatpush1.bf16.msra.mxu0 0
        %2094 = vmatprep.subr.bf16.mxu0 0
        %2095 = vmatpush1.bf16.msra.mxu0 0
        %2096 = vmatprep.subr.bf16.mxu0 0
        %2097 = vmatpush1.bf16.msra.mxu0 0
        %2098 = vmatprep.subr.bf16.mxu0 0
        %2099 = vmatpush1.bf16.msra.mxu0 0
        %2100 = vmatprep.subr.bf16.mxu0 0
        %2101 = vmatpush1.bf16.msra.mxu0 0
        %2102 = vmatprep.subr.bf16.mxu0 0
        %2103 = vmatpush1.bf16.msra.mxu0 0
        %2104 = vmatprep.mubr.bf16.mxu0 0
        %2105 = vmatmul.mubr.bf16.gmra.mrb[0].mxu0 %v2043
        %v2106 = vpop.f32.mrb[0].mxu0
        %v2107 = vadd.f32 %v1873, %v2106
        %v2108 = vpop.f32.mrb[0].mxu0
        %v2109 = vadd.f32 %v1875, %v2108
        %v2110 = vpop.f32.mrb[0].mxu0
        %v2111 = vpop.f32.mrb[0].mxu0
        %2112 = vdwg.mxu0
        %2113 = vmatprep.subr.bf16.mxu0 %v1712
        %2114 = vmatpush1.bf16.msra.mxu0 %v1708
        %2115 = vmatprep.subr.bf16.mxu0 %v2055
        %2116 = vmatpush1.bf16.msra.mxu0 %v2052
        %2117 = vmatprep.subr.bf16.mxu0 0
        %2118 = vmatpush1.bf16.msra.mxu0 0
        %2119 = vmatprep.subr.bf16.mxu0 0
        %2120 = vmatpush1.bf16.msra.mxu0 0
        %2121 = vmatprep.subr.bf16.mxu0 0
        %2122 = vmatpush1.bf16.msra.mxu0 0
        %2123 = vmatprep.subr.bf16.mxu0 0
        %2124 = vmatpush1.bf16.msra.mxu0 0
        %2125 = vmatprep.subr.bf16.mxu0 0
        %2126 = vmatpush1.bf16.msra.mxu0 0
        %2127 = vmatprep.subr.bf16.mxu0 0
        %2128 = vmatpush1.bf16.msra.mxu0 0
        %2129 = vmatprep.subr.bf16.mxu0 0
        %2130 = vmatpush1.bf16.msra.mxu0 0
        %2131 = vmatprep.subr.bf16.mxu0 0
        %2132 = vmatpush1.bf16.msra.mxu0 0
        %2133 = vmatprep.subr.bf16.mxu0 0
        %2134 = vmatpush1.bf16.msra.mxu0 0
        %2135 = vmatprep.subr.bf16.mxu0 0
        %2136 = vmatpush1.bf16.msra.mxu0 0
        %2137 = vmatprep.subr.bf16.mxu0 0
        %2138 = vmatpush1.bf16.msra.mxu0 0
        %2139 = vmatprep.subr.bf16.mxu0 0
        %2140 = vmatpush1.bf16.msra.mxu0 0
        %2141 = vmatprep.subr.bf16.mxu0 0
        %2142 = vmatpush1.bf16.msra.mxu0 0
        %2143 = vmatprep.subr.bf16.mxu0 0
        %2144 = vmatpush1.bf16.msra.mxu0 0
        %2145 = vmatprep.mubr.bf16.mxu0 0
        %2146 = vmatmul.mubr.bf16.gmra.mrb[0].mxu0 %v2043
        %v2147 = vpop.f32.mrb[0].mxu0
        %v2148 = vadd.f32 %v1914, %v2147
        %v2149 = vpop.f32.mrb[0].mxu0
        %v2150 = vadd.f32 %v1916, %v2149
        %v2151 = vpop.f32.mrb[0].mxu0
        %v2152 = vpop.f32.mrb[0].mxu0
        %2153 = vdwg.mxu0
        %2154 = vmatprep.subr.bf16.mxu0 %v1720
        %2155 = vmatpush1.bf16.msra.mxu0 %v1716
        %2156 = vmatprep.subr.bf16.mxu0 %v2061
        %2157 = vmatpush1.bf16.msra.mxu0 %v2058
        %2158 = vmatprep.subr.bf16.mxu0 0
        %2159 = vmatpush1.bf16.msra.mxu0 0
        %2160 = vmatprep.subr.bf16.mxu0 0
        %2161 = vmatpush1.bf16.msra.mxu0 0
        %2162 = vmatprep.subr.bf16.mxu0 0
        %2163 = vmatpush1.bf16.msra.mxu0 0
        %2164 = vmatprep.subr.bf16.mxu0 0
        %2165 = vmatpush1.bf16.msra.mxu0 0
        %2166 = vmatprep.subr.bf16.mxu0 0
        %2167 = vmatpush1.bf16.msra.mxu0 0
        %2168 = vmatprep.subr.bf16.mxu0 0
        %2169 = vmatpush1.bf16.msra.mxu0 0
        %2170 = vmatprep.subr.bf16.mxu0 0
        %2171 = vmatpush1.bf16.msra.mxu0 0
        %2172 = vmatprep.subr.bf16.mxu0 0
        %2173 = vmatpush1.bf16.msra.mxu0 0
        %2174 = vmatprep.subr.bf16.mxu0 0
        %2175 = vmatpush1.bf16.msra.mxu0 0
        %2176 = vmatprep.subr.bf16.mxu0 0
        %2177 = vmatpush1.bf16.msra.mxu0 0
        %2178 = vmatprep.subr.bf16.mxu0 0
        %2179 = vmatpush1.bf16.msra.mxu0 0
        %2180 = vmatprep.subr.bf16.mxu0 0
        %2181 = vmatpush1.bf16.msra.mxu0 0
        %2182 = vmatprep.subr.bf16.mxu0 0
        %2183 = vmatpush1.bf16.msra.mxu0 0
        %2184 = vmatprep.subr.bf16.mxu0 0
        %2185 = vmatpush1.bf16.msra.mxu0 0
        %2186 = vmatprep.mubr.bf16.mxu0 0
        %2187 = vmatmul.mubr.bf16.gmra.mrb[0].mxu0 %v2043
        %v2188 = vpop.f32.mrb[0].mxu0
        %v2189 = vadd.f32 %v1955, %v2188
        %v2190 = vpop.f32.mrb[0].mxu0
        %v2191 = vadd.f32 %v1957, %v2190
        %v2192 = vpop.f32.mrb[0].mxu0
        %v2193 = vpop.f32.mrb[0].mxu0
        %2194 = vdwg.mxu0
        %2195 = vmatprep.subr.bf16.mxu0 %v1728
        %2196 = vmatpush1.bf16.msra.mxu0 %v1724
        %2197 = vmatprep.subr.bf16.mxu0 %v2067
        %2198 = vmatpush1.bf16.msra.mxu0 %v2064
        %2199 = vmatprep.subr.bf16.mxu0 0
        %2200 = vmatpush1.bf16.msra.mxu0 0
        %2201 = vmatprep.subr.bf16.mxu0 0
        %2202 = vmatpush1.bf16.msra.mxu0 0
        %2203 = vmatprep.subr.bf16.mxu0 0
        %2204 = vmatpush1.bf16.msra.mxu0 0
        %2205 = vmatprep.subr.bf16.mxu0 0
        %2206 = vmatpush1.bf16.msra.mxu0 0
        %2207 = vmatprep.subr.bf16.mxu0 0
        %2208 = vmatpush1.bf16.msra.mxu0 0
        %2209 = vmatprep.subr.bf16.mxu0 0
        %2210 = vmatpush1.bf16.msra.mxu0 0
        %2211 = vmatprep.subr.bf16.mxu0 0
        %2212 = vmatpush1.bf16.msra.mxu0 0
        %2213 = vmatprep.subr.bf16.mxu0 0
        %2214 = vmatpush1.bf16.msra.mxu0 0
        %2215 = vmatprep.subr.bf16.mxu0 0
        %2216 = vmatpush1.bf16.msra.mxu0 0
        %2217 = vmatprep.subr.bf16.mxu0 0
        %2218 = vmatpush1.bf16.msra.mxu0 0
        %2219 = vmatprep.subr.bf16.mxu0 0
        %2220 = vmatpush1.bf16.msra.mxu0 0
        %2221 = vmatprep.subr.bf16.mxu0 0
        %2222 = vmatpush1.bf16.msra.mxu0 0
        %2223 = vmatprep.subr.bf16.mxu0 0
        %2224 = vmatpush1.bf16.msra.mxu0 0
        %2225 = vmatprep.subr.bf16.mxu0 0
        %2226 = vmatpush1.bf16.msra.mxu0 0
        %2227 = vmatprep.mubr.bf16.mxu0 0
        %2228 = vmatmul.mubr.bf16.gmra.mrb[0].mxu0 %v2043
        %v2229 = vpop.f32.mrb[0].mxu0
        %v2230 = vadd.f32 %v1996, %v2229
        %v2231 = vpop.f32.mrb[0].mxu0
        %v2232 = vadd.f32 %v1998, %v2231
        %v2233 = vpop.f32.mrb[0].mxu0
        %v2234 = vpop.f32.mrb[0].mxu0
        %2235 = vdwg.mxu0
        %2236 = vmatprep.subr.bf16.mxu0 0
        %2237 = vmatpush1.bf16.msra.mxu0 %v1732
        %2238 = vmatprep.subr.bf16.mxu0 0
        %2239 = vmatpush1.bf16.msra.mxu0 %v2070
        %2240 = vmatprep.subr.bf16.mxu0 0
        %2241 = vmatpush1.bf16.msra.mxu0 0
        %2242 = vmatprep.subr.bf16.mxu0 0
        %2243 = vmatpush1.bf16.msra.mxu0 0
        %2244 = vmatprep.subr.bf16.mxu0 0
        %2245 = vmatpush1.bf16.msra.mxu0 0
        %2246 = vmatprep.subr.bf16.mxu0 0
        %2247 = vmatpush1.bf16.msra.mxu0 0
        %2248 = vmatprep.subr.bf16.mxu0 0
        %2249 = vmatpush1.bf16.msra.mxu0 0
        %2250 = vmatprep.subr.bf16.mxu0 0
        %2251 = vmatpush1.bf16.msra.mxu0 0
        %2252 = vmatprep.subr.bf16.mxu0 0
        %2253 = vmatpush1.bf16.msra.mxu0 0
        %2254 = vmatprep.subr.bf16.mxu0 0
        %2255 = vmatpush1.bf16.msra.mxu0 0
        %2256 = vmatprep.subr.bf16.mxu0 0
        %2257 = vmatpush1.bf16.msra.mxu0 0
        %2258 = vmatprep.subr.bf16.mxu0 0
        %2259 = vmatpush1.bf16.msra.mxu0 0
        %2260 = vmatprep.subr.bf16.mxu0 0
        %2261 = vmatpush1.bf16.msra.mxu0 0
        %2262 = vmatprep.subr.bf16.mxu0 0
        %2263 = vmatpush1.bf16.msra.mxu0 0
        %2264 = vmatprep.subr.bf16.mxu0 0
        %2265 = vmatpush1.bf16.msra.mxu0 0
        %2266 = vmatprep.subr.bf16.mxu0 0
        %2267 = vmatpush1.bf16.msra.mxu0 0
        %2268 = vmatprep.mubr.bf16.mxu0 0
        %2269 = vmatmul.mubr.bf16.gmra.mrb[0].mxu0 %v2043
        %v2270 = vpop.f32.mrb[0].mxu0
        %v2271 = vadd.f32 %v2037, %v2270
        %v2272 = vpop.f32.mrb[0].mxu0
        %v2273 = vpop.f32.mrb[0].mxu0
        %v2274 = vpop.f32.mrb[0].mxu0
        %2275 = vdwg.mxu0
        %s2276 = scalar_lea.vmem %s3, 8
        %v2277 = vld [vmem:[%s2276] sm:$0xf]
        %2278 = vrot.lane.b32.xlu0 %v1700, 126
        %v2279 = vpop.permute.xlu0 %2278
        %2280 = vrot.lane.b32.xlu0 %v1704, 126
        %v2281 = vpop.permute.xlu0 %2280
        %2282 = vrot.lane.b32.xlu0 %v1708, 126
        %v2283 = vpop.permute.xlu0 %2282
        %2284 = vrot.lane.b32.xlu0 %v1712, 126
        %v2285 = vpop.permute.xlu0 %2284
        %2286 = vrot.lane.b32.xlu0 %v1716, 126
        %v2287 = vpop.permute.xlu0 %2286
        %2288 = vrot.lane.b32.xlu0 %v1720, 126
        %v2289 = vpop.permute.xlu0 %2288
        %2290 = vrot.lane.b32.xlu0 %v1724, 126
        %v2291 = vpop.permute.xlu0 %2290
        %2292 = vrot.lane.b32.xlu0 %v1728, 126
        %v2293 = vpop.permute.xlu0 %2292
        %2294 = vrot.lane.b32.xlu0 %v1732, 126
        %v2295 = vpop.permute.xlu0 %2294
        %2296 = vrot.lane.b32.xlu0 %v1690, 126
        %v2297 = vpop.permute.xlu0 %2296
        %2298 = vrot.lane.b32.xlu0 %v1691, 126
        %v2299 = vpop.permute.xlu0 %2298
        %2300 = vrot.lane.b32.xlu0 %v1692, 126
        %v2301 = vpop.permute.xlu0 %2300
        %2302 = vrot.lane.b32.xlu0 %v1693, 126
        %v2303 = vpop.permute.xlu0 %2302
        %2304 = vrot.lane.b32.xlu0 %v1694, 126
        %v2305 = vpop.permute.xlu0 %2304
        %2306 = vrot.lane.b32.xlu0 %v1695, 126
        %v2307 = vpop.permute.xlu0 %2306
        %2308 = vrot.lane.b32.xlu0 %v1696, 126
        %v2309 = vpop.permute.xlu0 %2308
        %2310 = vrot.lane.b32.xlu0 %v1697, 126
        %v2311 = vpop.permute.xlu0 %2310
        %2312 = vrot.lane.b32.xlu0 %v1698, 126
        %v2313 = vpop.permute.xlu0 %2312
        %v2314 = vsel %vm985, %v2279, %v2281
        %v2315 = vsel %vm985, %v2281, %v2283
        %v2316 = vsel %vm985, %v2283, %v2285
        %v2317 = vsel %vm985, %v2285, %v2287
        %v2318 = vsel %vm985, %v2287, %v2289
        %v2319 = vsel %vm985, %v2289, %v2291
        %v2320 = vsel %vm985, %v2291, %v2293
        %v2321 = vsel %vm985, %v2293, %v2295
        %v2322 = vsel %vm985, %v2297, %v2299
        %v2323 = vsel %vm985, %v2299, %v2301
        %v2324 = vsel %vm985, %v2301, %v2303
        %v2325 = vsel %vm985, %v2303, %v2305
        %v2326 = vsel %vm985, %v2305, %v2307
        %v2327 = vsel %vm985, %v2307, %v2309
        %v2328 = vsel %vm985, %v2309, %v2311
        %v2329 = vsel %vm985, %v2311, %v2313
        %v2340 = vsel %vm1807, %v2277, 0
        %v2343 = vsel %vm431, %v2322, 0
        %v2346 = vsel %vm431, %v2323, 0
        %v2349 = vsel %vm431, %v2324, 0
        %v2352 = vsel %vm431, %v2325, 0
        %v2355 = vsel %vm431, %v2326, 0
        %v2358 = vsel %vm431, %v2327, 0
        %v2361 = vsel %vm431, %v2328, 0
        %v2364 = vsel %vm431, %v2329, 0
        %v2367 = vsel %vm431, %v2313, 0
        %2369 = vmatprep.subr.bf16.mxu0 %v2315
        %2370 = vmatpush1.bf16.msra.mxu0 %v2314
        %2371 = vmatprep.subr.bf16.mxu0 %v2346
        %2372 = vmatpush1.bf16.msra.mxu0 %v2343
        %2373 = vmatprep.subr.bf16.mxu0 0
        %2374 = vmatpush1.bf16.msra.mxu0 0
        %2375 = vmatprep.subr.bf16.mxu0 0
        %2376 = vmatpush1.bf16.msra.mxu0 0
        %2377 = vmatprep.subr.bf16.mxu0 0
        %2378 = vmatpush1.bf16.msra.mxu0 0
        %2379 = vmatprep.subr.bf16.mxu0 0
        %2380 = vmatpush1.bf16.msra.mxu0 0
        %2381 = vmatprep.subr.bf16.mxu0 0
        %2382 = vmatpush1.bf16.msra.mxu0 0
        %2383 = vmatprep.subr.bf16.mxu0 0
        %2384 = vmatpush1.bf16.msra.mxu0 0
        %2385 = vmatprep.subr.bf16.mxu0 0
        %2386 = vmatpush1.bf16.msra.mxu0 0
        %2387 = vmatprep.subr.bf16.mxu0 0
        %2388 = vmatpush1.bf16.msra.mxu0 0
        %2389 = vmatprep.subr.bf16.mxu0 0
        %2390 = vmatpush1.bf16.msra.mxu0 0
        %2391 = vmatprep.subr.bf16.mxu0 0
        %2392 = vmatpush1.bf16.msra.mxu0 0
        %2393 = vmatprep.subr.bf16.mxu0 0
        %2394 = vmatpush1.bf16.msra.mxu0 0
        %2395 = vmatprep.subr.bf16.mxu0 0
        %2396 = vmatpush1.bf16.msra.mxu0 0
        %2397 = vmatprep.subr.bf16.mxu0 0
        %2398 = vmatpush1.bf16.msra.mxu0 0
        %2399 = vmatprep.subr.bf16.mxu0 0
        %2400 = vmatpush1.bf16.msra.mxu0 0
        %2401 = vmatprep.mubr.bf16.mxu0 0
        %2402 = vmatmul.mubr.bf16.gmra.mrb[0].mxu0 %v2340
        %v2403 = vpop.f32.mrb[0].mxu0
        %v2404 = vadd.f32 0.0, %v2403
        %v2405 = vpop.f32.mrb[0].mxu0
        %v2406 = vadd.f32 0.0, %v2405
        %v2407 = vpop.f32.mrb[0].mxu0
        %v2408 = vpop.f32.mrb[0].mxu0
        %2409 = vdwg.mxu0
        %2410 = vmatprep.subr.bf16.mxu0 %v2317
        %2411 = vmatpush1.bf16.msra.mxu0 %v2316
        %2412 = vmatprep.subr.bf16.mxu0 %v2352
        %2413 = vmatpush1.bf16.msra.mxu0 %v2349
        %2414 = vmatprep.subr.bf16.mxu0 0
        %2415 = vmatpush1.bf16.msra.mxu0 0
        %2416 = vmatprep.subr.bf16.mxu0 0
        %2417 = vmatpush1.bf16.msra.mxu0 0
        %2418 = vmatprep.subr.bf16.mxu0 0
        %2419 = vmatpush1.bf16.msra.mxu0 0
        %2420 = vmatprep.subr.bf16.mxu0 0
        %2421 = vmatpush1.bf16.msra.mxu0 0
        %2422 = vmatprep.subr.bf16.mxu0 0
        %2423 = vmatpush1.bf16.msra.mxu0 0
        %2424 = vmatprep.subr.bf16.mxu0 0
        %2425 = vmatpush1.bf16.msra.mxu0 0
        %2426 = vmatprep.subr.bf16.mxu0 0
        %2427 = vmatpush1.bf16.msra.mxu0 0
        %2428 = vmatprep.subr.bf16.mxu0 0
        %2429 = vmatpush1.bf16.msra.mxu0 0
        %2430 = vmatprep.subr.bf16.mxu0 0
        %2431 = vmatpush1.bf16.msra.mxu0 0
        %2432 = vmatprep.subr.bf16.mxu0 0
        %2433 = vmatpush1.bf16.msra.mxu0 0
        %2434 = vmatprep.subr.bf16.mxu0 0
        %2435 = vmatpush1.bf16.msra.mxu0 0
        %2436 = vmatprep.subr.bf16.mxu0 0
        %2437 = vmatpush1.bf16.msra.mxu0 0
        %2438 = vmatprep.subr.bf16.mxu0 0
        %2439 = vmatpush1.bf16.msra.mxu0 0
        %2440 = vmatprep.subr.bf16.mxu0 0
        %2441 = vmatpush1.bf16.msra.mxu0 0
        %2442 = vmatprep.mubr.bf16.mxu0 0
        %2443 = vmatmul.mubr.bf16.gmra.mrb[0].mxu0 %v2340
        %v2444 = vpop.f32.mrb[0].mxu0
        %v2445 = vadd.f32 0.0, %v2444
        %v2446 = vpop.f32.mrb[0].mxu0
        %v2447 = vadd.f32 0.0, %v2446
        %v2448 = vpop.f32.mrb[0].mxu0
        %v2449 = vpop.f32.mrb[0].mxu0
        %2450 = vdwg.mxu0
        %2451 = vmatprep.subr.bf16.mxu0 %v2319
        %2452 = vmatpush1.bf16.msra.mxu0 %v2318
        %2453 = vmatprep.subr.bf16.mxu0 %v2358
        %2454 = vmatpush1.bf16.msra.mxu0 %v2355
        %2455 = vmatprep.subr.bf16.mxu0 0
        %2456 = vmatpush1.bf16.msra.mxu0 0
        %2457 = vmatprep.subr.bf16.mxu0 0
        %2458 = vmatpush1.bf16.msra.mxu0 0
        %2459 = vmatprep.subr.bf16.mxu0 0
        %2460 = vmatpush1.bf16.msra.mxu0 0
        %2461 = vmatprep.subr.bf16.mxu0 0
        %2462 = vmatpush1.bf16.msra.mxu0 0
        %2463 = vmatprep.subr.bf16.mxu0 0
        %2464 = vmatpush1.bf16.msra.mxu0 0
        %2465 = vmatprep.subr.bf16.mxu0 0
        %2466 = vmatpush1.bf16.msra.mxu0 0
        %2467 = vmatprep.subr.bf16.mxu0 0
        %2468 = vmatpush1.bf16.msra.mxu0 0
        %2469 = vmatprep.subr.bf16.mxu0 0
        %2470 = vmatpush1.bf16.msra.mxu0 0
        %2471 = vmatprep.subr.bf16.mxu0 0
        %2472 = vmatpush1.bf16.msra.mxu0 0
        %2473 = vmatprep.subr.bf16.mxu0 0
        %2474 = vmatpush1.bf16.msra.mxu0 0
        %2475 = vmatprep.subr.bf16.mxu0 0
        %2476 = vmatpush1.bf16.msra.mxu0 0
        %2477 = vmatprep.subr.bf16.mxu0 0
        %2478 = vmatpush1.bf16.msra.mxu0 0
        %2479 = vmatprep.subr.bf16.mxu0 0
        %2480 = vmatpush1.bf16.msra.mxu0 0
        %2481 = vmatprep.subr.bf16.mxu0 0
        %2482 = vmatpush1.bf16.msra.mxu0 0
        %2483 = vmatprep.mubr.bf16.mxu0 0
        %2484 = vmatmul.mubr.bf16.gmra.mrb[0].mxu0 %v2340
        %v2485 = vpop.f32.mrb[0].mxu0
        %v2486 = vadd.f32 0.0, %v2485
        %v2487 = vpop.f32.mrb[0].mxu0
        %v2488 = vadd.f32 0.0, %v2487
        %v2489 = vpop.f32.mrb[0].mxu0
        %v2490 = vpop.f32.mrb[0].mxu0
        %2491 = vdwg.mxu0
        %2492 = vmatprep.subr.bf16.mxu0 %v2321
        %2493 = vmatpush1.bf16.msra.mxu0 %v2320
        %2494 = vmatprep.subr.bf16.mxu0 %v2364
        %2495 = vmatpush1.bf16.msra.mxu0 %v2361
        %2496 = vmatprep.subr.bf16.mxu0 0
        %2497 = vmatpush1.bf16.msra.mxu0 0
        %2498 = vmatprep.subr.bf16.mxu0 0
        %2499 = vmatpush1.bf16.msra.mxu0 0
        %2500 = vmatprep.subr.bf16.mxu0 0
        %2501 = vmatpush1.bf16.msra.mxu0 0
        %2502 = vmatprep.subr.bf16.mxu0 0
        %2503 = vmatpush1.bf16.msra.mxu0 0
        %2504 = vmatprep.subr.bf16.mxu0 0
        %2505 = vmatpush1.bf16.msra.mxu0 0
        %2506 = vmatprep.subr.bf16.mxu0 0
        %2507 = vmatpush1.bf16.msra.mxu0 0
        %2508 = vmatprep.subr.bf16.mxu0 0
        %2509 = vmatpush1.bf16.msra.mxu0 0
        %2510 = vmatprep.subr.bf16.mxu0 0
        %2511 = vmatpush1.bf16.msra.mxu0 0
        %2512 = vmatprep.subr.bf16.mxu0 0
        %2513 = vmatpush1.bf16.msra.mxu0 0
        %2514 = vmatprep.subr.bf16.mxu0 0
        %2515 = vmatpush1.bf16.msra.mxu0 0
        %2516 = vmatprep.subr.bf16.mxu0 0
        %2517 = vmatpush1.bf16.msra.mxu0 0
        %2518 = vmatprep.subr.bf16.mxu0 0
        %2519 = vmatpush1.bf16.msra.mxu0 0
        %2520 = vmatprep.subr.bf16.mxu0 0
        %2521 = vmatpush1.bf16.msra.mxu0 0
        %2522 = vmatprep.subr.bf16.mxu0 0
        %2523 = vmatpush1.bf16.msra.mxu0 0
        %2524 = vmatprep.mubr.bf16.mxu0 0
        %2525 = vmatmul.mubr.bf16.gmra.mrb[0].mxu0 %v2340
        %v2526 = vpop.f32.mrb[0].mxu0
        %v2527 = vadd.f32 0.0, %v2526
        %v2528 = vpop.f32.mrb[0].mxu0
        %v2529 = vadd.f32 0.0, %v2528
        %v2530 = vpop.f32.mrb[0].mxu0
        %v2531 = vpop.f32.mrb[0].mxu0
        %2532 = vdwg.mxu0
        %2533 = vmatprep.subr.bf16.mxu0 0
        %2534 = vmatpush1.bf16.msra.mxu0 %v2295
        %2535 = vmatprep.subr.bf16.mxu0 0
        %2536 = vmatpush1.bf16.msra.mxu0 %v2367
        %2537 = vmatprep.subr.bf16.mxu0 0
        %2538 = vmatpush1.bf16.msra.mxu0 0
        %2539 = vmatprep.subr.bf16.mxu0 0
        %2540 = vmatpush1.bf16.msra.mxu0 0
        %2541 = vmatprep.subr.bf16.mxu0 0
        %2542 = vmatpush1.bf16.msra.mxu0 0
        %2543 = vmatprep.subr.bf16.mxu0 0
        %2544 = vmatpush1.bf16.msra.mxu0 0
        %2545 = vmatprep.subr.bf16.mxu0 0
        %2546 = vmatpush1.bf16.msra.mxu0 0
        %2547 = vmatprep.subr.bf16.mxu0 0
        %2548 = vmatpush1.bf16.msra.mxu0 0
        %2549 = vmatprep.subr.bf16.mxu0 0
        %2550 = vmatpush1.bf16.msra.mxu0 0
        %2551 = vmatprep.subr.bf16.mxu0 0
        %2552 = vmatpush1.bf16.msra.mxu0 0
        %2553 = vmatprep.subr.bf16.mxu0 0
        %2554 = vmatpush1.bf16.msra.mxu0 0
        %2555 = vmatprep.subr.bf16.mxu0 0
        %2556 = vmatpush1.bf16.msra.mxu0 0
        %2557 = vmatprep.subr.bf16.mxu0 0
        %2558 = vmatpush1.bf16.msra.mxu0 0
        %2559 = vmatprep.subr.bf16.mxu0 0
        %2560 = vmatpush1.bf16.msra.mxu0 0
        %2561 = vmatprep.subr.bf16.mxu0 0
        %2562 = vmatpush1.bf16.msra.mxu0 0
        %2563 = vmatprep.subr.bf16.mxu0 0
        %2564 = vmatpush1.bf16.msra.mxu0 0
        %2565 = vmatprep.mubr.bf16.mxu0 0
        %2566 = vmatmul.mubr.bf16.gmra.mrb[0].mxu0 %v2340
        %v2567 = vpop.f32.mrb[0].mxu0
        %v2568 = vadd.f32 0.0, %v2567
        %v2569 = vpop.f32.mrb[0].mxu0
        %v2570 = vpop.f32.mrb[0].mxu0
        %v2571 = vpop.f32.mrb[0].mxu0
        %2572 = vdwg.mxu0
        %v2573 = vadd.f32 %v2107, %v2404
        %v2574 = vadd.f32 %v2109, %v2406
        %v2575 = vadd.f32 %v2148, %v2445
        %v2576 = vadd.f32 %v2150, %v2447
        %v2577 = vadd.f32 %v2189, %v2486
        %v2578 = vadd.f32 %v2191, %v2488
        %v2579 = vadd.f32 %v2230, %v2527
        %v2580 = vadd.f32 %v2232, %v2529
        %v2581 = vadd.f32 %v2271, %v2568
        %v2582 = vld [vmem:[%s4] sm:$0xff]
        %2584 = vset.pattern.permute.xlu0 0
        %2585 = vperm.xlu0 %2584, %v2582
        %v2586 = vpop.permute.xlu0 %2585
        %v2588 = vadd.f32 %v2573, %v2586
        %v2589 = vadd.f32 %v2574, %v2586
        %v2590 = vadd.f32 %v2575, %v2586
        %v2591 = vadd.f32 %v2576, %v2586
        %v2592 = vadd.f32 %v2577, %v2586
        %v2593 = vadd.f32 %v2578, %v2586
        %v2594 = vadd.f32 %v2579, %v2586
        %v2595 = vadd.f32 %v2580, %v2586
        %v2596 = vadd.f32 %v2581, %v2586
        %v2597 = vmul.f32 %v2588, 0.2
        %v2598 = vmul.f32 %v2589, 0.2
        %v2599 = vmul.f32 %v2590, 0.2
        %v2600 = vmul.f32 %v2591, 0.2
        %v2601 = vmul.f32 %v2592, 0.2
        %v2602 = vmul.f32 %v2593, 0.2
        %v2603 = vmul.f32 %v2594, 0.2
        %v2604 = vmul.f32 %v2595, 0.2
        %v2605 = vmul.f32 %v2596, 0.2
        %v2606 = vmax.f32 %v2588, %v2597
        %v2607 = vmax.f32 %v2589, %v2598
        %v2608 = vmax.f32 %v2590, %v2599
        %v2609 = vmax.f32 %v2591, %v2600
        %v2610 = vmax.f32 %v2592, %v2601
        %v2611 = vmax.f32 %v2593, %v2602
        %v2612 = vmax.f32 %v2594, %v2603
        %v2613 = vmax.f32 %v2595, %v2604
        %v2614 = vmax.f32 %v2596, %v2605
        %v2615 = vmul.f32 %v2606, %v2606
        %v2616 = vmul.f32 %v2607, %v2607
        %v2617 = vmul.f32 %v2608, %v2608
        %v2618 = vmul.f32 %v2609, %v2609
        %v2619 = vmul.f32 %v2610, %v2610
        %v2620 = vmul.f32 %v2611, %v2611
        %v2621 = vmul.f32 %v2612, %v2612
        %v2622 = vmul.f32 %v2613, %v2613
        %v2623 = vmul.f32 %v2614, %v2614
        %v2624 = vrot.slane %v2615, 4
        %v2625 = vadd.f32 %v2615, %v2624
        %v2626 = vrot.slane %v2625, 2
        %v2627 = vadd.f32 %v2625, %v2626
        %v2628 = vrot.slane %v2627, 1
        %v2629 = vadd.f32 %v2627, %v2628
        %v2630 = vrot.slane %v2616, 4
        %v2631 = vadd.f32 %v2616, %v2630
        %v2632 = vrot.slane %v2631, 2
        %v2633 = vadd.f32 %v2631, %v2632
        %v2634 = vrot.slane %v2633, 1
        %v2635 = vadd.f32 %v2633, %v2634
        %v2636 = vrot.slane %v2617, 4
        %v2637 = vadd.f32 %v2617, %v2636
        %v2638 = vrot.slane %v2637, 2
        %v2639 = vadd.f32 %v2637, %v2638
        %v2640 = vrot.slane %v2639, 1
        %v2641 = vadd.f32 %v2639, %v2640
        %v2642 = vrot.slane %v2618, 4
        %v2643 = vadd.f32 %v2618, %v2642
        %v2644 = vrot.slane %v2643, 2
        %v2645 = vadd.f32 %v2643, %v2644
        %v2646 = vrot.slane %v2645, 1
        %v2647 = vadd.f32 %v2645, %v2646
        %v2648 = vrot.slane %v2619, 4
        %v2649 = vadd.f32 %v2619, %v2648
        %v2650 = vrot.slane %v2649, 2
        %v2651 = vadd.f32 %v2649, %v2650
        %v2652 = vrot.slane %v2651, 1
        %v2653 = vadd.f32 %v2651, %v2652
        %v2654 = vrot.slane %v2620, 4
        %v2655 = vadd.f32 %v2620, %v2654
        %v2656 = vrot.slane %v2655, 2
        %v2657 = vadd.f32 %v2655, %v2656
        %v2658 = vrot.slane %v2657, 1
        %v2659 = vadd.f32 %v2657, %v2658
        %v2660 = vrot.slane %v2621, 4
        %v2661 = vadd.f32 %v2621, %v2660
        %v2662 = vrot.slane %v2661, 2
        %v2663 = vadd.f32 %v2661, %v2662
        %v2664 = vrot.slane %v2663, 1
        %v2665 = vadd.f32 %v2663, %v2664
        %v2666 = vrot.slane %v2622, 4
        %v2667 = vadd.f32 %v2622, %v2666
        %v2668 = vrot.slane %v2667, 2
        %v2669 = vadd.f32 %v2667, %v2668
        %v2670 = vrot.slane %v2669, 1
        %v2671 = vadd.f32 %v2669, %v2670
        %v2672 = vsel %vm1448, %v2623, 0.0
        %v2673 = vrot.slane %v2672, 4
        %v2674 = vadd.f32 %v2672, %v2673
        %v2675 = vrot.slane %v2674, 2
        %v2676 = vadd.f32 %v2674, %v2675
        %v2677 = vrot.slane %v2676, 1
        %v2678 = vadd.f32 %v2676, %v2677
        %v2679 = vmul.f32 %v2629, %v1351
        %v2680 = vmul.f32 %v2635, %v1351
        %v2681 = vmul.f32 %v2641, %v1351
        %v2682 = vmul.f32 %v2647, %v1351
        %v2683 = vmul.f32 %v2653, %v1351
        %v2684 = vmul.f32 %v2659, %v1351
        %v2685 = vmul.f32 %v2665, %v1351
        %v2686 = vmul.f32 %v2671, %v1351
        %v2687 = vmul.f32 %v2678, %v1351
        %v2688 = vadd.f32 %v2679, 1e-08
        %v2689 = vadd.f32 %v2680, 1e-08
        %v2690 = vadd.f32 %v2681, 1e-08
        %v2691 = vadd.f32 %v2682, 1e-08
        %v2692 = vadd.f32 %v2683, 1e-08
        %v2693 = vadd.f32 %v2684, 1e-08
        %v2694 = vadd.f32 %v2685, 1e-08
        %v2695 = vadd.f32 %v2686, 1e-08
        %v2696 = vadd.f32 %v2687, 1e-08
        %v2697 = vrsqrt.pop %v2688
        %v2698 = vrsqrt.pop %v2689
        %v2699 = vrsqrt.pop %v2690
        %v2700 = vrsqrt.pop %v2691
        %v2701 = vrsqrt.pop %v2692
        %v2702 = vrsqrt.pop %v2693
        %v2703 = vrsqrt.pop %v2694
        %v2704 = vrsqrt.pop %v2695
        %v2705 = vrsqrt.pop %v2696
        %v2706 = vmul.f32 %v2606, %v2697
        %v2707 = vmul.f32 %v2607, %v2698
        %v2708 = vmul.f32 %v2608, %v2699
        %v2709 = vmul.f32 %v2609, %v2700
        %v2710 = vmul.f32 %v2610, %v2701
        %v2711 = vmul.f32 %v2611, %v2702
        %v2712 = vmul.f32 %v2612, %v2703
        %v2713 = vmul.f32 %v2613, %v2704
        %v2714 = vmul.f32 %v2614, %v2705
        %2715 = vst [vmem:[%s258] sm:$0xff] %v2706
        %2716 = vst [vmem:[%s258 + $0x8] sm:$0xff] %v2707
        %2717 = vst [vmem:[%s258 + $0x10] sm:$0xff] %v2708
        %2718 = vst [vmem:[%s258 + $0x18] sm:$0xff] %v2709
        %2719 = vst [vmem:[%s258 + $0x20] sm:$0xff] %v2710
        %2720 = vst [vmem:[%s258 + $0x28] sm:$0xff] %v2711
        %2721 = vst [vmem:[%s258 + $0x30] sm:$0xff] %v2712
        %2722 = vst [vmem:[%s258 + $0x38] sm:$0xff] %v2713
        %2723 = vst.msk [vmem:[%s258 + $0x40] sm:$0xff] %vm1448, %v2714
        %s2724 = sand.u32 %s156, 1
        %s2725 = scalar_lea.sflag [#allocation4], %s2724
        %s2726 = sand.u32 %s156, 1
        %s2727 = smul.addr %s2726, 72
        %s2728 = scalar_lea.vmem [#allocation5], %s2727
        // Predicated region
        $region45: #{tpu_custom_call.1} parent=39 // pred_check
          %p2729 = pneg %p166
        $region46: #{tpu_custom_call.1} parent=39 // pred_check_branch
          %2731 = sbr.rel (%p2729) target = $region48
        $region47: #{tpu_custom_call.1} parent=39 // pred_region
          %s2733 = ssub.s32 1152, 1152
          %2734 = vsyncadd %s2725, %s2733
          %s2735 = smul.addr %s27, 9
          %s2736 = smul.addr %s26, 9
          %s2737 = sadd.s32 %s2735, %s2736
          %s2738 = smul.addr %s2737, 128
          %s2739 = scalar_lea.hbm %s5, %s2738
          %s2741 = sshll.u32 %s2728, 4
          %s2742 = int_to_ptr.vmem [resolvable:$true] %s2741
          %2744 = dma.vmem_to_hbm [thread:$0]  %s2742, 1152, %s2739, %s2725
        $region48: #{tpu_custom_call.1} parent=39 // pred_fallthru
          _
      $region40: #{tpu_custom_call.1} parent=5 // pred_fallthru
        _
      %p2745 = scmp.le.s32.totalorder 2, %s17
      // Predicated region
      $region49: #{tpu_custom_call.1} parent=5 // pred_check
        %p2746 = pneg %p2745
      $region50: #{tpu_custom_call.1} parent=5 // pred_check_branch
        %2748 = sbr.rel (%p2746) target = $region52
      $region51: #{tpu_custom_call.1} parent=5 // pred_region
        %s2749 = ssub.s32 %s17, 2
        // Predicated region
        $region53: #{tpu_custom_call.1} parent=51 // pred_check
          %p2750 = pneg %p172
        $region54: #{tpu_custom_call.1} parent=51 // pred_check_branch
          %2752 = sbr.rel (%p2750) target = $region56
        $region55: #{tpu_custom_call.1} parent=51 // pred_region
          %s2753 = sand.u32 %s157, 1
          %s2754 = scalar_lea.sflag [#allocation4], %s2753
          %s2755 = sand.u32 %s157, 1
          %s2756 = smul.addr %s2755, 72
          %s2757 = scalar_lea.vmem [#allocation5], %s2756
          %2758 = dma.done %s2754, 1152
        $region56: #{tpu_custom_call.1} parent=51 // pred_fallthru
          _
      $region52: #{tpu_custom_call.1} parent=5 // pred_fallthru
        _
    $region6: #{tpu_custom_call.1} parent=1 // loop_footer
      %s21 = sadd.s32 1, %s17
    $region7: #{tpu_custom_call.1} parent=1 // loop_footer_branch
      %16 = sbr.rel target = $region3
    $region8: #{tpu_custom_call.1} parent=1 // loop_exit
      _
    %2759 = vsyncpa [#allocation3], 1
    %s2760 = scalar_lea.sflag [#allocation3], 1
    %2761 = vsyncpa %s2760, 1
    %2762 = vsyncpa [#allocation4], 1
    %s2763 = scalar_lea.sflag [#allocation4], 1
    %2764 = vsyncpa %s2763, 1

</llo_original>
